<compile_context>
chip_gen: v7x
topology: tpu7x:2x2x1
jax: 0.10.0
libtpu: 0.0.40
codegen_flags: <defaults>
</compile_context>

<pallas_src>
import functools

import jax
import jax.numpy as jnp
from jax.experimental import pallas as pl
from jax.experimental.pallas import tpu as pltpu

LEAK = 0.2
BN_EPS = 1e-5
CP = 128          # channels padded to a full 128-lane width
LP = 128          # latten padded to a full 128-lane width


def _round_up(n, m):
    return ((n + m - 1) // m) * m


# ---------------------------------------------------------------------------
# Fused Pallas kernel: expand conv -> all residual stages -> shrink, per chunk
# ---------------------------------------------------------------------------
def _fused_kernel(x_ref, *refs, fws, rows0):
    """One grid step = one (batch, output-frame-chunk) pair, fully in VMEM.

    refs = [expand_w, expand_b,
            (w1, b1, w2, b2) per stage ...,
            shrink_w, shrink_b,
            o_ref, act_scratch]
    """
    n_stage = len(fws) - 1
    we_ref, be_ref = refs[0], refs[1]
    stage_refs = refs[2:2 + 4 * n_stage]
    ws_ref = refs[2 + 4 * n_stage]
    bs_ref = refs[3 + 4 * n_stage]
    o_ref = refs[4 + 4 * n_stage]
    act_ref = refs[5 + 4 * n_stage]          # (rows0_pad, CP) f32 scratch

    def lrelu(v):
        return jnp.maximum(v, LEAK * v)      # one VPU op cheaper than where()

    # expand conv (stride == kernel, input pre-im2col'd) + folded BN + LeakyReLU
    xm = x_ref[0].astype(jnp.bfloat16)                                   # (rows0, fw0*cin)
    y = lrelu(jnp.dot(xm, we_ref[...], preferred_element_type=jnp.float32)
              + be_ref[...])                                             # (rows0, CP) f32
    t = rows0

    # residual stages: strided conv + BN + LReLU -> 1x1 conv + BN + LReLU -> +residual
    for i in range(n_stage):
        fw = fws[i + 1]
        w1_ref, b1_ref, w2_ref, b2_ref = stage_refs[4 * i:4 * i + 4]
        tn = t // fw                          # exact by construction (chunking)

        act_ref[:t, :] = y                    # stage input, kept in f32 in VMEM
        # strided conv as a sum over kernel taps; each tap is a strided sublane load
        acc = jnp.dot(act_ref[pl.ds(0, tn, stride=fw), :].astype(jnp.bfloat16),
                      w1_ref[0], preferred_element_type=jnp.float32)
        for k in range(1, fw):
            acc = acc + jnp.dot(act_ref[pl.ds(k, tn, stride=fw), :].astype(jnp.bfloat16),
                                w1_ref[k], preferred_element_type=jnp.float32)
        h = lrelu(acc + b1_ref[...])

        y2 = lrelu(jnp.dot(h.astype(jnp.bfloat16), w2_ref[...],
                           preferred_element_type=jnp.float32) + b2_ref[...])

        res = act_ref[pl.ds(fw // 2, tn, stride=fw), :]   # f32 residual (matches PyTorch)
        y = res + y2
        t = tn

    # shrink: 1x1 conv + bias (no BN / activation); output kept 128-lane padded
    out = jnp.dot(y.astype(jnp.bfloat16), ws_ref[...],
                  preferred_element_type=jnp.float32) + bs_ref[...]
    o_ref[0] = out.astype(o_ref.dtype)


# ---------------------------------------------------------------------------
# Parameter initialization (deterministic, synthetic) + BN folding / prep
# ---------------------------------------------------------------------------
def _bn_params(keys, c):
    return dict(
        gamma=jax.random.uniform(next(keys), (c,), jnp.float32, 0.5, 1.5),
        beta=jax.random.normal(next(keys), (c,), jnp.float32) * 0.1,
        mean=jax.random.normal(next(keys), (c,), jnp.float32) * 0.1,
        var=jax.random.uniform(next(keys), (c,), jnp.float32, 0.5, 1.5),
    )


def init_params(key, num_joints_in, in_features, filter_widths, channels, latten):
    cin = num_joints_in * in_features
    keys = iter(jax.random.split(key, 128))

    def conv_w(shape):
        return jax.random.normal(next(keys), shape, jnp.float32) * 0.05

    params = {
        "expand_w": conv_w((channels, cin, filter_widths[0])),
        "expand_bn": _bn_params(keys, channels),
        "layers": [],
        "shrink_w": conv_w((latten, channels, 1)),
        "shrink_b": jax.random.normal(next(keys), (latten,), jnp.float32) * 0.1,
    }
    for i in range(1, len(filter_widths)):
        params["layers"].append(
            dict(
                w1=conv_w((channels, channels, filter_widths[i])),
                bn1=_bn_params(keys, channels),
                w2=conv_w((channels, channels, 1)),
                bn2=_bn_params(keys, channels),
            )
        )
    return params


def bn_fold(bn):
    scale = bn["gamma"] / jnp.sqrt(bn["var"] + BN_EPS)
    bias = bn["beta"] - bn["mean"] * scale
    return scale, bias


def prepare_params(params, filter_widths, channels, latten, cp=CP, lp=LP):
    """Fold BN scale into weight columns, transpose to matmul layout once, and
    zero-pad channels/latten to 128 lanes (padded cols get zero weight & bias)."""
    C = channels
    cin = params["expand_w"].shape[1]
    fw0 = filter_widths[0]

    def pad_bias(b, n_to):
        return jnp.pad(b, (0, n_to - b.shape[0])).reshape(1, n_to).astype(jnp.float32)

    # expand conv: rows indexed (k, ci) to match the NTC im2col ordering
    s, b = bn_fold(params["expand_bn"])
    we = jnp.transpose(params["expand_w"], (2, 1, 0)).reshape(fw0 * cin, C) * s[None, :]
    prep = {
        "expand_w": jnp.pad(we, ((0, 0), (0, cp - C))).astype(jnp.bfloat16),
        "expand_b": pad_bias(b, cp),
        "stages": [],
    }

    for i, layer in enumerate(params["layers"]):
        fw = filter_widths[i + 1]
        s1, b1 = bn_fold(layer["bn1"])
        w1 = jnp.transpose(layer["w1"], (2, 1, 0)) * s1[None, None, :]   # (fw, Cin, Cout)
        w1p = jnp.zeros((fw, cp, cp), jnp.float32).at[:, :C, :C].set(w1)
        s2, b2 = bn_fold(layer["bn2"])
        w2 = layer["w2"][:, :, 0].T * s2[None, :]                        # (Cin, Cout)
        w2p = jnp.zeros((cp, cp), jnp.float32).at[:C, :C].set(w2)
        prep["stages"].append(dict(
            w1=w1p.astype(jnp.bfloat16),     # kept (fw, CP, CP): per-tap matmuls in-kernel
            b1=pad_bias(b1, cp),
            w2=w2p.astype(jnp.bfloat16),
            b2=pad_bias(b2, cp),
        ))

    ws = params["shrink_w"][:, :, 0].T                                   # (C, latten)
    wsp = jnp.zeros((cp, lp), jnp.float32).at[:C, :latten].set(ws)
    prep["shrink_w"] = wsp.astype(jnp.bfloat16)
    prep["shrink_b"] = pad_bias(params["shrink_b"], lp)
    return prep


# ---------------------------------------------------------------------------
# Forward pass
# ---------------------------------------------------------------------------
def _device_tuning():
    """(vmem_limit_bytes, target_rows_per_chunk) — bigger on 128-MiB-VMEM parts."""
    try:
        kind = jax.devices()[0].device_kind.lower()
    except Exception:
        kind = ""
    if "v5" in kind or "v6" in kind:
        return 96 * 1024 * 1024, 1024
    return 32 * 1024 * 1024, 512          # conservative for v7x (64 MiB) / unknown


def _check_alignment(T, fws):
    """Assert residual and conv lengths agree at every stage (as PyTorch requires)
    and return the final temporal length T_last."""
    fw0 = fws[0]
    assert T >= fw0, f"T={T} shorter than first filter width {fw0}"
    t = (T - fw0) // fw0 + 1
    for fw in fws[1:]:
        conv_len = (t - fw) // fw + 1
        res_len = len(range(fw // 2, t, fw))
        assert conv_len >= 1 and conv_len == res_len, (
            f"TemporalBlock T alignment: stage len={t}, fw={fw} "
            f"(conv={conv_len}, res={res_len}) — PyTorch module would fail here.")
        t = conv_len
    return t


def _pick_chunk_frames(t_last, rows_per_frame, target_rows):
    """Output frames per grid step: divides t_last exactly; multiple of 8 if > 1 chunk."""
    def valid(f):
        return t_last % f == 0 and (f == t_last or f % 8 == 0)
    f = max(1, min(t_last, target_rows // max(rows_per_frame, 1)))
    while f > 1 and not valid(f):
        f -= 1
    if not valid(f):
        f = t_last
    return f


def temporal_block_forward(x, prep, *, filter_widths, latten, cp=CP, lp=LP):
    # x: (B, num_joints_in*in_features, T) -- PyTorch Conv1d NCT layout.
    B, cin, T = x.shape
    fws = tuple(int(f) for f in filter_widths)
    fw0 = fws[0]
    n_stage = len(fws) - 1

    T_last = _check_alignment(T, fws)
    rf = 1
    for f in fws:
        rf *= f                                   # input frames per final output frame
    rows_per_frame = rf // fw0                    # expand-output rows per final frame
    t_use = T_last * rf                           # trailing frames never affect outputs

    vmem_limit, target_rows = _device_tuning()
    F = _pick_chunk_frames(T_last, rows_per_frame, target_rows)
    n_chunks = T_last // F
    rows0 = F * rows_per_frame                    # expand-output rows per grid step

    # Single NCT->NTC transpose + truncation + pure-reshape im2col of the expand conv.
    x_ntc = jnp.transpose(x, (0, 2, 1))[:, :t_use, :]                  # (B, t_use, cin)
    xm = x_ntc.reshape(B, T_last * rows_per_frame, fw0 * cin)          # (B, rows_tot, fw0*cin)

    consts = [prep["expand_w"], prep["expand_b"]]
    for st in prep["stages"]:
        consts += [st["w1"], st["b1"], st["w2"], st["b2"]]
    consts += [prep["shrink_w"], prep["shrink_b"]]

    def const_spec(arr):
        nd = arr.ndim
        return pl.BlockSpec(arr.shape, lambda b, c, _n=nd: (0,) * _n)

    in_specs = [pl.BlockSpec((1, rows0, fw0 * cin), lambda b, c: (b, c, 0))]
    in_specs += [const_spec(c) for c in consts]

    kernel = functools.partial(_fused_kernel, fws=fws, rows0=rows0)
    out = pl.pallas_call(
        kernel,
        out_shape=jax.ShapeDtypeStruct((B, T_last, lp), jnp.float32),
        grid=(B, n_chunks),
        in_specs=in_specs,
        out_specs=pl.BlockSpec((1, F, lp), lambda b, c: (b, c, 0)),
        scratch_shapes=[pltpu.VMEM((_round_up(max(rows0, 8), 8), cp), jnp.float32)],
        compiler_params=pltpu.CompilerParams(
            dimension_semantics=("parallel", "parallel"),
            vmem_limit_bytes=vmem_limit,
        ),
    )(xm, *consts)

    # drop the 128-lane padding once, outside the kernel (stores stay lane-dense)
    out = out[:, :, :latten]
    # permute(0,2,1).reshape(B*T, latten).unsqueeze(1) -- rows already (b, t) ordered
    return out.reshape(B * T_last, latten)[:, None, :]


# ---------------------------------------------------------------------------
if __name__ == "__main__":
    key = jax.random.PRNGKey(0)
    kp, kx = jax.random.split(key)

    B = 2
    num_joints_in, in_features = 4, 2        # C_in = 8
    filter_widths = [3, 3, 3]                # receptive field = 27
    channels, latten = 64, 32
    T = 27

    params = init_params(kp, num_joints_in, in_features, filter_widths, channels, latten)
    prep = prepare_params(params, filter_widths, channels, latten)
    x = jax.random.normal(kx, (B, num_joints_in * in_features, T), jnp.float32)

    fwd = jax.jit(functools.partial(
        temporal_block_forward, filter_widths=filter_widths, latten=latten))
    out = fwd(x, prep)
    jax.block_until_ready(out)
    assert out.shape == (B * 1, 1, latten), out.shape   # T collapses 27 -> 9 -> 3 -> 1
    print("KERNEL_OK")
</pallas_src>

<mosaic_0001>
module attributes {stable_mosaic.version = 11 : i64} {
  func.func @_fused_kernel(%arg0: i32, %arg1: i32, %arg2: memref<1x9x24xf32, #tpu.memory_space<vmem>>, %arg3: memref<24x128xbf16, #tpu.memory_space<vmem>>, %arg4: memref<1x128xf32, #tpu.memory_space<vmem>>, %arg5: memref<3x128x128xbf16, #tpu.memory_space<vmem>>, %arg6: memref<1x128xf32, #tpu.memory_space<vmem>>, %arg7: memref<128x128xbf16, #tpu.memory_space<vmem>>, %arg8: memref<1x128xf32, #tpu.memory_space<vmem>>, %arg9: memref<3x128x128xbf16, #tpu.memory_space<vmem>>, %arg10: memref<1x128xf32, #tpu.memory_space<vmem>>, %arg11: memref<128x128xbf16, #tpu.memory_space<vmem>>, %arg12: memref<1x128xf32, #tpu.memory_space<vmem>>, %arg13: memref<128x128xbf16, #tpu.memory_space<vmem>>, %arg14: memref<1x128xf32, #tpu.memory_space<vmem>>, %arg15: memref<1x1x128xf32, #tpu.memory_space<vmem>>, %arg16: memref<16x128xf32, #tpu.memory_space<vmem>>) attributes {dimension_semantics = [#tpu.dimension_semantics<parallel>, #tpu.dimension_semantics<parallel>], iteration_bounds = array<i64: 2, 1>, scalar_prefetch = 0 : i64, scratch_operands = 1 : i64, tpu.core_type = #tpu.core_type<tc>, window_params = [{transform_indices = @transform_0, window_bounds = array<i64: 1, 9, 24>}, {pipeline_mode = #tpu.pipeline_mode<synchronous>, transform_indices = @transform_1, window_bounds = array<i64: 24, 128>}, {pipeline_mode = #tpu.pipeline_mode<synchronous>, transform_indices = @transform_2, window_bounds = array<i64: 1, 128>}, {pipeline_mode = #tpu.pipeline_mode<synchronous>, transform_indices = @transform_3, window_bounds = array<i64: 3, 128, 128>}, {pipeline_mode = #tpu.pipeline_mode<synchronous>, transform_indices = @transform_4, window_bounds = array<i64: 1, 128>}, {pipeline_mode = #tpu.pipeline_mode<synchronous>, transform_indices = @transform_5, window_bounds = array<i64: 128, 128>}, {pipeline_mode = #tpu.pipeline_mode<synchronous>, transform_indices = @transform_6, window_bounds = array<i64: 1, 128>}, {pipeline_mode = #tpu.pipeline_mode<synchronous>, transform_indices = @transform_7, window_bounds = array<i64: 3, 128, 128>}, {pipeline_mode = #tpu.pipeline_mode<synchronous>, transform_indices = @transform_8, window_bounds = array<i64: 1, 128>}, {pipeline_mode = #tpu.pipeline_mode<synchronous>, transform_indices = @transform_9, window_bounds = array<i64: 128, 128>}, {pipeline_mode = #tpu.pipeline_mode<synchronous>, transform_indices = @transform_10, window_bounds = array<i64: 1, 128>}, {pipeline_mode = #tpu.pipeline_mode<synchronous>, transform_indices = @transform_11, window_bounds = array<i64: 128, 128>}, {pipeline_mode = #tpu.pipeline_mode<synchronous>, transform_indices = @transform_12, window_bounds = array<i64: 1, 128>}, {transform_indices = @transform_13, window_bounds = array<i64: 1, 1, 128>}]} {
    %c0 = arith.constant 0 : index
    %c0_0 = arith.constant 0 : index
    %c0_1 = arith.constant 0 : index
    %0 = vector.load %arg2[%c0, %c0_0, %c0_1] : memref<1x9x24xf32, #tpu.memory_space<vmem>>, vector<1x9x24xf32>
    %1 = vector.shape_cast %0 : vector<1x9x24xf32> to vector<9x24xf32>
    %2 = arith.truncf %1 : vector<9x24xf32> to vector<9x24xbf16>
    %c0_2 = arith.constant 0 : index
    %c0_3 = arith.constant 0 : index
    %3 = vector.load %arg3[%c0_2, %c0_3] : memref<24x128xbf16, #tpu.memory_space<vmem>>, vector<24x128xbf16>
    %cst = arith.constant dense<0.000000e+00> : vector<9x128xf32>
    %4 = tpu.matmul %2, %3, %cst {dimension_numbers = #tpu.dot_dimension_numbers<[1], [0], [0], [1], [0, 0, 1, 1], [], []>} : vector<9x24xbf16>, vector<24x128xbf16>, vector<9x128xf32> -> vector<9x128xf32>
    %c0_4 = arith.constant 0 : index
    %c0_5 = arith.constant 0 : index
    %5 = vector.load %arg4[%c0_4, %c0_5] : memref<1x128xf32, #tpu.memory_space<vmem>>, vector<1x128xf32>
    %6 = vector.broadcast %5 : vector<1x128xf32> to vector<9x128xf32>
    %7 = arith.addf %4, %6 : vector<9x128xf32>
    %cst_6 = arith.constant 2.000000e-01 : f32
    %8 = vector.broadcast %cst_6 : f32 to vector<9x128xf32>
    %9 = arith.mulf %8, %7 : vector<9x128xf32>
    %10 = arith.maximumf %7, %9 : vector<9x128xf32>
    %c0_7 = arith.constant 0 : index
    %c0_8 = arith.constant 0 : index
    %11 = vector.load %arg16[%c0_7, %c0_8] : memref<16x128xf32, #tpu.memory_space<vmem>>, vector<9x128xf32>
    tpu.vector_store %arg16[%c0_7, %c0_8], %10 {strides = array<i32>} : memref<16x128xf32, #tpu.memory_space<vmem>>, vector<9x128xf32>,
    %c0_9 = arith.constant 0 : index
    %c0_10 = arith.constant 0 : index
    %12 = tpu.strided_load %arg16[%c0_9, %c0_10] {strides = array<i32: 3, 1>} : memref<16x128xf32, #tpu.memory_space<vmem>>, vector<3x128xf32>
    %13 = arith.truncf %12 : vector<3x128xf32> to vector<3x128xbf16>
    %c0_11 = arith.constant 0 : index
    %c0_12 = arith.constant 0 : index
    %c0_13 = arith.constant 0 : index
    %14 = vector.load %arg5[%c0_11, %c0_12, %c0_13] : memref<3x128x128xbf16, #tpu.memory_space<vmem>>, vector<1x128x128xbf16>
    %15 = vector.shape_cast %14 : vector<1x128x128xbf16> to vector<128x128xbf16>
    %cst_14 = arith.constant dense<0.000000e+00> : vector<3x128xf32>
    %16 = tpu.matmul %13, %15, %cst_14 {dimension_numbers = #tpu.dot_dimension_numbers<[1], [0], [0], [1], [0, 0, 1, 1], [], []>} : vector<3x128xbf16>, vector<128x128xbf16>, vector<3x128xf32> -> vector<3x128xf32>
    %c1 = arith.constant 1 : index
    %c0_15 = arith.constant 0 : index
    %17 = tpu.strided_load %arg16[%c1, %c0_15] {strides = array<i32: 3, 1>} : memref<16x128xf32, #tpu.memory_space<vmem>>, vector<3x128xf32>
    %18 = arith.truncf %17 : vector<3x128xf32> to vector<3x128xbf16>
    %c1_16 = arith.constant 1 : index
    %c0_17 = arith.constant 0 : index
    %c0_18 = arith.constant 0 : index
    %19 = vector.load %arg5[%c1_16, %c0_17, %c0_18] : memref<3x128x128xbf16, #tpu.memory_space<vmem>>, vector<1x128x128xbf16>
    %20 = vector.shape_cast %19 : vector<1x128x128xbf16> to vector<128x128xbf16>
    %cst_19 = arith.constant dense<0.000000e+00> : vector<3x128xf32>
    %21 = tpu.matmul %18, %20, %cst_19 {dimension_numbers = #tpu.dot_dimension_numbers<[1], [0], [0], [1], [0, 0, 1, 1], [], []>} : vector<3x128xbf16>, vector<128x128xbf16>, vector<3x128xf32> -> vector<3x128xf32>
    %22 = arith.addf %16, %21 : vector<3x128xf32>
    %c2 = arith.constant 2 : index
    %c0_20 = arith.constant 0 : index
    %23 = tpu.strided_load %arg16[%c2, %c0_20] {strides = array<i32: 3, 1>} : memref<16x128xf32, #tpu.memory_space<vmem>>, vector<3x128xf32>
    %24 = arith.truncf %23 : vector<3x128xf32> to vector<3x128xbf16>
    %c2_21 = arith.constant 2 : index
    %c0_22 = arith.constant 0 : index
    %c0_23 = arith.constant 0 : index
    %25 = vector.load %arg5[%c2_21, %c0_22, %c0_23] : memref<3x128x128xbf16, #tpu.memory_space<vmem>>, vector<1x128x128xbf16>
    %26 = vector.shape_cast %25 : vector<1x128x128xbf16> to vector<128x128xbf16>
    %cst_24 = arith.constant dense<0.000000e+00> : vector<3x128xf32>
    %27 = tpu.matmul %24, %26, %cst_24 {dimension_numbers = #tpu.dot_dimension_numbers<[1], [0], [0], [1], [0, 0, 1, 1], [], []>} : vector<3x128xbf16>, vector<128x128xbf16>, vector<3x128xf32> -> vector<3x128xf32>
    %28 = arith.addf %22, %27 : vector<3x128xf32>
    %c0_25 = arith.constant 0 : index
    %c0_26 = arith.constant 0 : index
    %29 = vector.load %arg6[%c0_25, %c0_26] : memref<1x128xf32, #tpu.memory_space<vmem>>, vector<1x128xf32>
    %30 = vector.broadcast %29 : vector<1x128xf32> to vector<3x128xf32>
    %31 = arith.addf %28, %30 : vector<3x128xf32>
    %cst_27 = arith.constant 2.000000e-01 : f32
    %32 = vector.broadcast %cst_27 : f32 to vector<3x128xf32>
    %33 = arith.mulf %32, %31 : vector<3x128xf32>
    %34 = arith.maximumf %31, %33 : vector<3x128xf32>
    %35 = arith.truncf %34 : vector<3x128xf32> to vector<3x128xbf16>
    %c0_28 = arith.constant 0 : index
    %c0_29 = arith.constant 0 : index
    %36 = vector.load %arg7[%c0_28, %c0_29] : memref<128x128xbf16, #tpu.memory_space<vmem>>, vector<128x128xbf16>
    %cst_30 = arith.constant dense<0.000000e+00> : vector<3x128xf32>
    %37 = tpu.matmul %35, %36, %cst_30 {dimension_numbers = #tpu.dot_dimension_numbers<[1], [0], [0], [1], [0, 0, 1, 1], [], []>} : vector<3x128xbf16>, vector<128x128xbf16>, vector<3x128xf32> -> vector<3x128xf32>
    %c0_31 = arith.constant 0 : index
    %c0_32 = arith.constant 0 : index
    %38 = vector.load %arg8[%c0_31, %c0_32] : memref<1x128xf32, #tpu.memory_space<vmem>>, vector<1x128xf32>
    %39 = vector.broadcast %38 : vector<1x128xf32> to vector<3x128xf32>
    %40 = arith.addf %37, %39 : vector<3x128xf32>
    %cst_33 = arith.constant 2.000000e-01 : f32
    %41 = vector.broadcast %cst_33 : f32 to vector<3x128xf32>
    %42 = arith.mulf %41, %40 : vector<3x128xf32>
    %43 = arith.maximumf %40, %42 : vector<3x128xf32>
    %c1_34 = arith.constant 1 : index
    %c0_35 = arith.constant 0 : index
    %44 = tpu.strided_load %arg16[%c1_34, %c0_35] {strides = array<i32: 3, 1>} : memref<16x128xf32, #tpu.memory_space<vmem>>, vector<3x128xf32>
    %45 = arith.addf %44, %43 : vector<3x128xf32>
    %c0_36 = arith.constant 0 : index
    %c0_37 = arith.constant 0 : index
    %46 = vector.load %arg16[%c0_36, %c0_37] : memref<16x128xf32, #tpu.memory_space<vmem>>, vector<3x128xf32>
    tpu.vector_store %arg16[%c0_36, %c0_37], %45 {strides = array<i32>} : memref<16x128xf32, #tpu.memory_space<vmem>>, vector<3x128xf32>,
    %c0_38 = arith.constant 0 : index
    %c0_39 = arith.constant 0 : index
    %47 = tpu.strided_load %arg16[%c0_38, %c0_39] {strides = array<i32: 3, 1>} : memref<16x128xf32, #tpu.memory_space<vmem>>, vector<1x128xf32>
    %48 = arith.truncf %47 : vector<1x128xf32> to vector<1x128xbf16>
    %c0_40 = arith.constant 0 : index
    %c0_41 = arith.constant 0 : index
    %c0_42 = arith.constant 0 : index
    %49 = vector.load %arg9[%c0_40, %c0_41, %c0_42] : memref<3x128x128xbf16, #tpu.memory_space<vmem>>, vector<1x128x128xbf16>
    %50 = vector.shape_cast %49 : vector<1x128x128xbf16> to vector<128x128xbf16>
    %cst_43 = arith.constant dense<0.000000e+00> : vector<1x128xf32>
    %51 = tpu.matmul %48, %50, %cst_43 {dimension_numbers = #tpu.dot_dimension_numbers<[1], [0], [0], [1], [0, 0, 1, 1], [], []>} : vector<1x128xbf16>, vector<128x128xbf16>, vector<1x128xf32> -> vector<1x128xf32>
    %c1_44 = arith.constant 1 : index
    %c0_45 = arith.constant 0 : index
    %52 = tpu.strided_load %arg16[%c1_44, %c0_45] {strides = array<i32: 3, 1>} : memref<16x128xf32, #tpu.memory_space<vmem>>, vector<1x128xf32>
    %53 = arith.truncf %52 : vector<1x128xf32> to vector<1x128xbf16>
    %c1_46 = arith.constant 1 : index
    %c0_47 = arith.constant 0 : index
    %c0_48 = arith.constant 0 : index
    %54 = vector.load %arg9[%c1_46, %c0_47, %c0_48] : memref<3x128x128xbf16, #tpu.memory_space<vmem>>, vector<1x128x128xbf16>
    %55 = vector.shape_cast %54 : vector<1x128x128xbf16> to vector<128x128xbf16>
    %cst_49 = arith.constant dense<0.000000e+00> : vector<1x128xf32>
    %56 = tpu.matmul %53, %55, %cst_49 {dimension_numbers = #tpu.dot_dimension_numbers<[1], [0], [0], [1], [0, 0, 1, 1], [], []>} : vector<1x128xbf16>, vector<128x128xbf16>, vector<1x128xf32> -> vector<1x128xf32>
    %57 = arith.addf %51, %56 : vector<1x128xf32>
    %c2_50 = arith.constant 2 : index
    %c0_51 = arith.constant 0 : index
    %58 = tpu.strided_load %arg16[%c2_50, %c0_51] {strides = array<i32: 3, 1>} : memref<16x128xf32, #tpu.memory_space<vmem>>, vector<1x128xf32>
    %59 = arith.truncf %58 : vector<1x128xf32> to vector<1x128xbf16>
    %c2_52 = arith.constant 2 : index
    %c0_53 = arith.constant 0 : index
    %c0_54 = arith.constant 0 : index
    %60 = vector.load %arg9[%c2_52, %c0_53, %c0_54] : memref<3x128x128xbf16, #tpu.memory_space<vmem>>, vector<1x128x128xbf16>
    %61 = vector.shape_cast %60 : vector<1x128x128xbf16> to vector<128x128xbf16>
    %cst_55 = arith.constant dense<0.000000e+00> : vector<1x128xf32>
    %62 = tpu.matmul %59, %61, %cst_55 {dimension_numbers = #tpu.dot_dimension_numbers<[1], [0], [0], [1], [0, 0, 1, 1], [], []>} : vector<1x128xbf16>, vector<128x128xbf16>, vector<1x128xf32> -> vector<1x128xf32>
    %63 = arith.addf %57, %62 : vector<1x128xf32>
    %c0_56 = arith.constant 0 : index
    %c0_57 = arith.constant 0 : index
    %64 = vector.load %arg10[%c0_56, %c0_57] : memref<1x128xf32, #tpu.memory_space<vmem>>, vector<1x128xf32>
    %65 = arith.addf %63, %64 : vector<1x128xf32>
    %cst_58 = arith.constant 2.000000e-01 : f32
    %66 = vector.broadcast %cst_58 : f32 to vector<1x128xf32>
    %67 = arith.mulf %66, %65 : vector<1x128xf32>
    %68 = arith.maximumf %65, %67 : vector<1x128xf32>
    %69 = arith.truncf %68 : vector<1x128xf32> to vector<1x128xbf16>
    %c0_59 = arith.constant 0 : index
    %c0_60 = arith.constant 0 : index
    %70 = vector.load %arg11[%c0_59, %c0_60] : memref<128x128xbf16, #tpu.memory_space<vmem>>, vector<128x128xbf16>
    %cst_61 = arith.constant dense<0.000000e+00> : vector<1x128xf32>
    %71 = tpu.matmul %69, %70, %cst_61 {dimension_numbers = #tpu.dot_dimension_numbers<[1], [0], [0], [1], [0, 0, 1, 1], [], []>} : vector<1x128xbf16>, vector<128x128xbf16>, vector<1x128xf32> -> vector<1x128xf32>
    %c0_62 = arith.constant 0 : index
    %c0_63 = arith.constant 0 : index
    %72 = vector.load %arg12[%c0_62, %c0_63] : memref<1x128xf32, #tpu.memory_space<vmem>>, vector<1x128xf32>
    %73 = arith.addf %71, %72 : vector<1x128xf32>
    %cst_64 = arith.constant 2.000000e-01 : f32
    %74 = vector.broadcast %cst_64 : f32 to vector<1x128xf32>
    %75 = arith.mulf %74, %73 : vector<1x128xf32>
    %76 = arith.maximumf %73, %75 : vector<1x128xf32>
    %c1_65 = arith.constant 1 : index
    %c0_66 = arith.constant 0 : index
    %77 = tpu.strided_load %arg16[%c1_65, %c0_66] {strides = array<i32: 3, 1>} : memref<16x128xf32, #tpu.memory_space<vmem>>, vector<1x128xf32>
    %78 = arith.addf %77, %76 : vector<1x128xf32>
    %79 = arith.truncf %78 : vector<1x128xf32> to vector<1x128xbf16>
    %c0_67 = arith.constant 0 : index
    %c0_68 = arith.constant 0 : index
    %80 = vector.load %arg13[%c0_67, %c0_68] : memref<128x128xbf16, #tpu.memory_space<vmem>>, vector<128x128xbf16>
    %cst_69 = arith.constant dense<0.000000e+00> : vector<1x128xf32>
    %81 = tpu.matmul %79, %80, %cst_69 {dimension_numbers = #tpu.dot_dimension_numbers<[1], [0], [0], [1], [0, 0, 1, 1], [], []>} : vector<1x128xbf16>, vector<128x128xbf16>, vector<1x128xf32> -> vector<1x128xf32>
    %c0_70 = arith.constant 0 : index
    %c0_71 = arith.constant 0 : index
    %82 = vector.load %arg14[%c0_70, %c0_71] : memref<1x128xf32, #tpu.memory_space<vmem>>, vector<1x128xf32>
    %83 = arith.addf %81, %82 : vector<1x128xf32>
    %c0_72 = arith.constant 0 : index
    %c0_73 = arith.constant 0 : index
    %c0_74 = arith.constant 0 : index
    %84 = vector.load %arg15[%c0_72, %c0_73, %c0_74] : memref<1x1x128xf32, #tpu.memory_space<vmem>>, vector<1x1x128xf32>
    %85 = vector.shape_cast %84 : vector<1x1x128xf32> to vector<1x128xf32>
    %86 = vector.shape_cast %83 : vector<1x128xf32> to vector<1x1x128xf32>
    tpu.vector_store %arg15[%c0_72, %c0_73, %c0_74], %86 {strides = array<i32>} : memref<1x1x128xf32, #tpu.memory_space<vmem>>, vector<1x1x128xf32>,
    return
  }
  func.func @transform_0(%arg0: i32, %arg1: i32) -> (i32, i32, i32) {
    %c0_i32 = arith.constant 0 : i32
    %c0_i32_0 = arith.constant 0 : i32
    return %arg0, %arg1, %c0_i32 : i32, i32, i32
  }
  func.func @transform_1(%arg0: i32, %arg1: i32) -> (i32, i32) {
    %c0_i32 = arith.constant 0 : i32
    %c0_i32_0 = arith.constant 0 : i32
    %c0_i32_1 = arith.constant 0 : i32
    return %c0_i32, %c0_i32_0 : i32, i32
  }
  func.func @transform_2(%arg0: i32, %arg1: i32) -> (i32, i32) {
    %c0_i32 = arith.constant 0 : i32
    %c0_i32_0 = arith.constant 0 : i32
    %c0_i32_1 = arith.constant 0 : i32
    return %c0_i32, %c0_i32_0 : i32, i32
  }
  func.func @transform_3(%arg0: i32, %arg1: i32) -> (i32, i32, i32) {
    %c0_i32 = arith.constant 0 : i32
    %c0_i32_0 = arith.constant 0 : i32
    %c0_i32_1 = arith.constant 0 : i32
    %c0_i32_2 = arith.constant 0 : i32
    return %c0_i32, %c0_i32_0, %c0_i32_1 : i32, i32, i32
  }
  func.func @transform_4(%arg0: i32, %arg1: i32) -> (i32, i32) {
    %c0_i32 = arith.constant 0 : i32
    %c0_i32_0 = arith.constant 0 : i32
    %c0_i32_1 = arith.constant 0 : i32
    return %c0_i32, %c0_i32_0 : i32, i32
  }
  func.func @transform_5(%arg0: i32, %arg1: i32) -> (i32, i32) {
    %c0_i32 = arith.constant 0 : i32
    %c0_i32_0 = arith.constant 0 : i32
    %c0_i32_1 = arith.constant 0 : i32
    return %c0_i32, %c0_i32_0 : i32, i32
  }
  func.func @transform_6(%arg0: i32, %arg1: i32) -> (i32, i32) {
    %c0_i32 = arith.constant 0 : i32
    %c0_i32_0 = arith.constant 0 : i32
    %c0_i32_1 = arith.constant 0 : i32
    return %c0_i32, %c0_i32_0 : i32, i32
  }
  func.func @transform_7(%arg0: i32, %arg1: i32) -> (i32, i32, i32) {
    %c0_i32 = arith.constant 0 : i32
    %c0_i32_0 = arith.constant 0 : i32
    %c0_i32_1 = arith.constant 0 : i32
    %c0_i32_2 = arith.constant 0 : i32
    return %c0_i32, %c0_i32_0, %c0_i32_1 : i32, i32, i32
  }
  func.func @transform_8(%arg0: i32, %arg1: i32) -> (i32, i32) {
    %c0_i32 = arith.constant 0 : i32
    %c0_i32_0 = arith.constant 0 : i32
    %c0_i32_1 = arith.constant 0 : i32
    return %c0_i32, %c0_i32_0 : i32, i32
  }
  func.func @transform_9(%arg0: i32, %arg1: i32) -> (i32, i32) {
    %c0_i32 = arith.constant 0 : i32
    %c0_i32_0 = arith.constant 0 : i32
    %c0_i32_1 = arith.constant 0 : i32
    return %c0_i32, %c0_i32_0 : i32, i32
  }
  func.func @transform_10(%arg0: i32, %arg1: i32) -> (i32, i32) {
    %c0_i32 = arith.constant 0 : i32
    %c0_i32_0 = arith.constant 0 : i32
    %c0_i32_1 = arith.constant 0 : i32
    return %c0_i32, %c0_i32_0 : i32, i32
  }
  func.func @transform_11(%arg0: i32, %arg1: i32) -> (i32, i32) {
    %c0_i32 = arith.constant 0 : i32
    %c0_i32_0 = arith.constant 0 : i32
    %c0_i32_1 = arith.constant 0 : i32
    return %c0_i32, %c0_i32_0 : i32, i32
  }
  func.func @transform_12(%arg0: i32, %arg1: i32) -> (i32, i32) {
    %c0_i32 = arith.constant 0 : i32
    %c0_i32_0 = arith.constant 0 : i32
    %c0_i32_1 = arith.constant 0 : i32
    return %c0_i32, %c0_i32_0 : i32, i32
  }
  func.func @transform_13(%arg0: i32, %arg1: i32) -> (i32, i32, i32) {
    %c0_i32 = arith.constant 0 : i32
    %c0_i32_0 = arith.constant 0 : i32
    return %arg0, %arg1, %c0_i32 : i32, i32, i32
  }
}

</mosaic_0001>

<llo_original>
// kernel: temporal_block_forward.1
$region0: #{temporal_block_forward.1}
  #allocation0 [shape = 'u32[]', space=smem, size = 0x4, offset = 0x4, fixed_abs, tag = 'smem constant byte address 0x4 - core index']
  #allocation1 [shape = 'u32[144,128]{1,0:T(1,128)}', space=vmem, size = 0x12000, scoped, tag = 'internal scratch']
  #allocation2 [shape = 'f32[16,128]{1,0:T(8,128)}', space=vmem, size = 0x2000, scoped, tag = 'scratch operand']
  %s0 = inlined_call_operand.vmem [shape: f32[2,9,24], index: 0, kind: input, shape index: {}]
  %s1 = inlined_call_operand.vmem [shape: bf16[24,128], index: 1, kind: input, shape index: {}]
  %s2 = inlined_call_operand.vmem [shape: f32[1,128], index: 2, kind: input, shape index: {}]
  %s3 = inlined_call_operand.vmem [shape: bf16[3,128,128], index: 3, kind: input, shape index: {}]
  %s4 = inlined_call_operand.vmem [shape: f32[1,128], index: 4, kind: input, shape index: {}]
  %s5 = inlined_call_operand.hbm [shape: bf16[128,128], index: 5, kind: input, shape index: {}]
  %s6 = inlined_call_operand.hbm [shape: f32[1,128], index: 6, kind: input, shape index: {}]
  %s7 = inlined_call_operand.hbm [shape: bf16[3,128,128], index: 7, kind: input, shape index: {}]
  %s8 = inlined_call_operand.vmem [shape: f32[1,128], index: 8, kind: input, shape index: {}]
  %s9 = inlined_call_operand.hbm [shape: bf16[128,128], index: 9, kind: input, shape index: {}]
  %s10 = inlined_call_operand.vmem [shape: f32[1,128], index: 10, kind: input, shape index: {}]
  %s11 = inlined_call_operand.hbm [shape: bf16[128,128], index: 11, kind: input, shape index: {}]
  %s12 = inlined_call_operand.hbm [shape: f32[1,128], index: 12, kind: input, shape index: {}]
  %s13 = inlined_call_operand.hbm [shape: f32[2,1,128], index: 13, kind: output, shape index: {}]
  %s14 = sld [smem:[#allocation0]]
  $region109: #{temporal_block_forward.1} parent=0
    _
  %s16 = ssub.s32 1, %s14
  %s17 = scalar_select 0, %s16, %s14
  $region1: #{temporal_block_forward.1} parent=0
    #allocation3 [shape = 'u8[32768]{0}', space=vmem, size = 0x8000, scoped, tag = 'input window, operand 5, single buffered']
    #allocation4 [shape = 's32[2]{0}', space=sflag, size = 0x8, scoped, tag = 'scoped memory for temporal_block_forward.1']
    #allocation5 [shape = 's32[2]{0}', space=sflag, size = 0x8, scoped, tag = 'scoped memory for temporal_block_forward.1']
    #allocation6 [shape = 'u8[512]{0}', space=vmem, size = 0x400, scoped, tag = 'input window, operand 6, single buffered']
    #allocation7 [shape = 's32[1]{0}', space=sflag, size = 0x4, scoped, tag = 'scoped memory for temporal_block_forward.1']
    #allocation8 [shape = 'u8[98304]{0}', space=vmem, size = 0x18000, scoped, tag = 'input window, operand 7, single buffered']
    #allocation9 [shape = 'u8[32768]{0}', space=vmem, size = 0x8000, scoped, tag = 'input window, operand 9, single buffered']
    #allocation10 [shape = 's32[1]{0}', space=sflag, size = 0x4, scoped, tag = 'scoped memory for temporal_block_forward.1']
    #allocation11 [shape = 'u8[32768]{0}', space=vmem, size = 0x8000, scoped, tag = 'input window, operand 11, single buffered']
    #allocation12 [shape = 'u8[512]{0}', space=vmem, size = 0x400, scoped, tag = 'input window, operand 12, single buffered']
    #allocation13 [shape = 's32[1]{0}', space=sflag, size = 0x4, scoped, tag = 'scoped memory for temporal_block_forward.1']
    #allocation14 [shape = 'u8[1024]{0}', space=vmem, size = 0x400, scoped, tag = 'output window, operand 0']
    %18 = vsyncpa [#allocation4], 0
    %19 = vsyncpa [#allocation7], 0
    %20 = vsyncpa [#allocation10], 0
    %21 = vsyncpa [#allocation13], 0
    %22 = vsyncpa [#allocation5], 0
    %s23 = scalar_lea.sflag [#allocation5], 1
    %24 = vsyncpa %s23, 0
    loop: start=0, step=1, limit=4
    $region2: #{temporal_block_forward.1} parent=1 // loop_pre_header
      _
    $region3: #{temporal_block_forward.1} parent=1 // loop_header
      %s26 = sphi 0, %s30
      %p27 = scmp.ge.s32.totalorder %s26, 4
      %s33 = sphi 0, %s45
      %s34 = sphi 0, %s41
      %s35 = sphi 0, %s33
      %s36 = sphi 0, %s34
      %s37 = sphi 0, %s35
      %s38 = sphi 0, %s36
      %s50 = sphi 0, %s52
      %s53 = sphi 0, %s50
      %s54 = sphi 0, %s53
      %s70 = sphi 0, %s54
      %s74 = sphi 0, %s74
      %s76 = sphi 0, %s74
      %s77 = sphi 0, %s76
      %s91 = sphi 0, %s77
      %s95 = sphi 0, %s95
      %s97 = sphi 0, %s95
      %s98 = sphi 0, %s97
      %s112 = sphi 0, %s98
      %s116 = sphi 0, %s116
      %s118 = sphi 0, %s116
      %s119 = sphi 0, %s118
      %s133 = sphi 0, %s119
      %s137 = sphi 0, %s137
      %s139 = sphi 0, %s137
      %s140 = sphi 0, %s139
      %s154 = sphi 0, %s140
      %s158 = sphi 0, %s158
      %s160 = sphi 0, %s158
      %s161 = sphi 0, %s160
      %s175 = sphi 0, %s161
      %s179 = sphi 0, %s179
      %s181 = sphi 0, %s179
      %s182 = sphi 0, %s181
      %s196 = sphi 0, %s182
      %s200 = sphi 0, %s200
      %s202 = sphi 0, %s200
      %s203 = sphi 0, %s202
      %s217 = sphi 0, %s203
      %s221 = sphi 0, %s221
      %s223 = sphi 0, %s221
      %s224 = sphi 0, %s223
      %s238 = sphi 0, %s224
      %s242 = sphi 0, %s242
      %s244 = sphi 0, %s242
      %s245 = sphi 0, %s244
      %s259 = sphi 0, %s245
      %s263 = sphi 0, %s263
      %s265 = sphi 0, %s263
      %s266 = sphi 0, %s265
      %s280 = sphi 0, %s266
      %s284 = sphi 0, %s284
      %s286 = sphi 0, %s284
      %s287 = sphi 0, %s286
      %s301 = sphi 0, %s287
      %s305 = sphi 0, %s305
      %s307 = sphi 0, %s305
      %s308 = sphi 0, %s307
      %s322 = sphi 0, %s308
      %s330 = sphi 0, %s332
      %s333 = sphi 0, %s330
      %s334 = sphi 0, %s333
      %s350 = sphi 0, %s334
    $region4: #{temporal_block_forward.1} parent=1 // loop_header_branch
      %29 = sbr.rel (%p27) target = $region8
    $region5: #{temporal_block_forward.1} parent=1 // loop_body
      %s31 = ssub.s32 %s26, 1
      %s32 = ssub.s32 %s26, 2
      %s39 = sadd.s32 1, %s34
      %p40 = scmp.ge.s32.totalorder %s39, 1
      %s41 = scalar_select %p40, 0, %s39
      %s42 = sadd.s32 1, %s33
      %s43 = scalar_select %p40, %s42, %s33
      %p44 = scmp.ge.s32.totalorder %s43, 2
      %s45 = scalar_select %p44, 0, %s43
      %s46 = ssub.s32 %s33, %s45
      %s47 = ssub.s32 %s34, %s41
      %s48 = sor.u32 %s46, %s47
      %p49 = scmp.eq.s32.totalorder %s48, 0
      %s51 = sadd.s32 %s50, 1
      %s52 = scalar_select %p49, %s50, %s51
      %p55 = pneg %p49
      %p56 = scmp.eq.s32.totalorder %s26, 1
      %p57 = por %p55, %p56
      %p58 = scmp.ne.s32.totalorder %s50, %s53
      %p59 = scmp.eq.s32.totalorder %s26, 0
      %p60 = por %p58, %p59
      %p61 = scmp.ne.s32.totalorder %s50, %s53
      %p62 = scmp.eq.s32.totalorder %s31, 1
      %p63 = por %p61, %p62
      %p64 = scmp.ne.s32.totalorder %s53, %s54
      %p65 = scmp.eq.s32.totalorder %s31, 0
      %p66 = por %p64, %p65
      %p67 = scmp.ne.s32.totalorder %s53, %s54
      %p68 = scmp.eq.s32.totalorder %s32, 1
      %p69 = por %p67, %p68
      %p71 = scmp.ne.s32.totalorder %s54, %s70
      %p72 = scmp.eq.s32.totalorder %s32, 0
      %p73 = por %p71, %p72
      %s75 = sadd.s32 %s74, 1
      %p78 = scmp.eq.s32.totalorder %s26, 1
      %p79 = scmp.ne.s32.totalorder %s74, %s76
      %p80 = scmp.eq.s32.totalorder %s26, 0
      %p81 = por %p79, %p80
      %p82 = scmp.ne.s32.totalorder %s74, %s76
      %p83 = scmp.eq.s32.totalorder %s31, 1
      %p84 = por %p82, %p83
      %p85 = scmp.ne.s32.totalorder %s76, %s77
      %p86 = scmp.eq.s32.totalorder %s31, 0
      %p87 = por %p85, %p86
      %p88 = scmp.ne.s32.totalorder %s76, %s77
      %p89 = scmp.eq.s32.totalorder %s32, 1
      %p90 = por %p88, %p89
      %p92 = scmp.ne.s32.totalorder %s77, %s91
      %p93 = scmp.eq.s32.totalorder %s32, 0
      %p94 = por %p92, %p93
      %s96 = sadd.s32 %s95, 1
      %p99 = scmp.eq.s32.totalorder %s26, 1
      %p100 = scmp.ne.s32.totalorder %s95, %s97
      %p101 = scmp.eq.s32.totalorder %s26, 0
      %p102 = por %p100, %p101
      %p103 = scmp.ne.s32.totalorder %s95, %s97
      %p104 = scmp.eq.s32.totalorder %s31, 1
      %p105 = por %p103, %p104
      %p106 = scmp.ne.s32.totalorder %s97, %s98
      %p107 = scmp.eq.s32.totalorder %s31, 0
      %p108 = por %p106, %p107
      %p109 = scmp.ne.s32.totalorder %s97, %s98
      %p110 = scmp.eq.s32.totalorder %s32, 1
      %p111 = por %p109, %p110
      %p113 = scmp.ne.s32.totalorder %s98, %s112
      %p114 = scmp.eq.s32.totalorder %s32, 0
      %p115 = por %p113, %p114
      %s117 = sadd.s32 %s116, 1
      %p120 = scmp.eq.s32.totalorder %s26, 1
      %p121 = scmp.ne.s32.totalorder %s116, %s118
      %p122 = scmp.eq.s32.totalorder %s26, 0
      %p123 = por %p121, %p122
      %p124 = scmp.ne.s32.totalorder %s116, %s118
      %p125 = scmp.eq.s32.totalorder %s31, 1
      %p126 = por %p124, %p125
      %p127 = scmp.ne.s32.totalorder %s118, %s119
      %p128 = scmp.eq.s32.totalorder %s31, 0
      %p129 = por %p127, %p128
      %p130 = scmp.ne.s32.totalorder %s118, %s119
      %p131 = scmp.eq.s32.totalorder %s32, 1
      %p132 = por %p130, %p131
      %p134 = scmp.ne.s32.totalorder %s119, %s133
      %p135 = scmp.eq.s32.totalorder %s32, 0
      %p136 = por %p134, %p135
      %s138 = sadd.s32 %s137, 1
      %p141 = scmp.eq.s32.totalorder %s26, 1
      %p142 = scmp.ne.s32.totalorder %s137, %s139
      %p143 = scmp.eq.s32.totalorder %s26, 0
      %p144 = por %p142, %p143
      %p145 = scmp.ne.s32.totalorder %s137, %s139
      %p146 = scmp.eq.s32.totalorder %s31, 1
      %p147 = por %p145, %p146
      %p148 = scmp.ne.s32.totalorder %s139, %s140
      %p149 = scmp.eq.s32.totalorder %s31, 0
      %p150 = por %p148, %p149
      %p151 = scmp.ne.s32.totalorder %s139, %s140
      %p152 = scmp.eq.s32.totalorder %s32, 1
      %p153 = por %p151, %p152
      %p155 = scmp.ne.s32.totalorder %s140, %s154
      %p156 = scmp.eq.s32.totalorder %s32, 0
      %p157 = por %p155, %p156
      %s159 = sadd.s32 %s158, 1
      %p162 = scmp.eq.s32.totalorder %s26, 1
      %p163 = scmp.ne.s32.totalorder %s158, %s160
      %p164 = scmp.eq.s32.totalorder %s26, 0
      %p165 = por %p163, %p164
      %p166 = scmp.ne.s32.totalorder %s158, %s160
      %p167 = scmp.eq.s32.totalorder %s31, 1
      %p168 = por %p166, %p167
      %p169 = scmp.ne.s32.totalorder %s160, %s161
      %p170 = scmp.eq.s32.totalorder %s31, 0
      %p171 = por %p169, %p170
      %p172 = scmp.ne.s32.totalorder %s160, %s161
      %p173 = scmp.eq.s32.totalorder %s32, 1
      %p174 = por %p172, %p173
      %p176 = scmp.ne.s32.totalorder %s161, %s175
      %p177 = scmp.eq.s32.totalorder %s32, 0
      %p178 = por %p176, %p177
      %s180 = sadd.s32 %s179, 1
      %p183 = scmp.eq.s32.totalorder %s26, 1
      %p184 = scmp.ne.s32.totalorder %s179, %s181
      %p185 = scmp.eq.s32.totalorder %s26, 0
      %p186 = por %p184, %p185
      %p187 = scmp.ne.s32.totalorder %s179, %s181
      %p188 = scmp.eq.s32.totalorder %s31, 1
      %p189 = por %p187, %p188
      %p190 = scmp.ne.s32.totalorder %s181, %s182
      %p191 = scmp.eq.s32.totalorder %s31, 0
      %p192 = por %p190, %p191
      %p193 = scmp.ne.s32.totalorder %s181, %s182
      %p194 = scmp.eq.s32.totalorder %s32, 1
      %p195 = por %p193, %p194
      %p197 = scmp.ne.s32.totalorder %s182, %s196
      %p198 = scmp.eq.s32.totalorder %s32, 0
      %p199 = por %p197, %p198
      %s201 = sadd.s32 %s200, 1
      %p204 = scmp.eq.s32.totalorder %s26, 1
      %p205 = scmp.ne.s32.totalorder %s200, %s202
      %p206 = scmp.eq.s32.totalorder %s26, 0
      %p207 = por %p205, %p206
      %p208 = scmp.ne.s32.totalorder %s200, %s202
      %p209 = scmp.eq.s32.totalorder %s31, 1
      %p210 = por %p208, %p209
      %p211 = scmp.ne.s32.totalorder %s202, %s203
      %p212 = scmp.eq.s32.totalorder %s31, 0
      %p213 = por %p211, %p212
      %p214 = scmp.ne.s32.totalorder %s202, %s203
      %p215 = scmp.eq.s32.totalorder %s32, 1
      %p216 = por %p214, %p215
      %p218 = scmp.ne.s32.totalorder %s203, %s217
      %p219 = scmp.eq.s32.totalorder %s32, 0
      %p220 = por %p218, %p219
      %s222 = sadd.s32 %s221, 1
      %p225 = scmp.eq.s32.totalorder %s26, 1
      %p226 = scmp.ne.s32.totalorder %s221, %s223
      %p227 = scmp.eq.s32.totalorder %s26, 0
      %p228 = por %p226, %p227
      %p229 = scmp.ne.s32.totalorder %s221, %s223
      %p230 = scmp.eq.s32.totalorder %s31, 1
      %p231 = por %p229, %p230
      %p232 = scmp.ne.s32.totalorder %s223, %s224
      %p233 = scmp.eq.s32.totalorder %s31, 0
      %p234 = por %p232, %p233
      %p235 = scmp.ne.s32.totalorder %s223, %s224
      %p236 = scmp.eq.s32.totalorder %s32, 1
      %p237 = por %p235, %p236
      %p239 = scmp.ne.s32.totalorder %s224, %s238
      %p240 = scmp.eq.s32.totalorder %s32, 0
      %p241 = por %p239, %p240
      %s243 = sadd.s32 %s242, 1
      %p246 = scmp.eq.s32.totalorder %s26, 1
      %p247 = scmp.ne.s32.totalorder %s242, %s244
      %p248 = scmp.eq.s32.totalorder %s26, 0
      %p249 = por %p247, %p248
      %p250 = scmp.ne.s32.totalorder %s242, %s244
      %p251 = scmp.eq.s32.totalorder %s31, 1
      %p252 = por %p250, %p251
      %p253 = scmp.ne.s32.totalorder %s244, %s245
      %p254 = scmp.eq.s32.totalorder %s31, 0
      %p255 = por %p253, %p254
      %p256 = scmp.ne.s32.totalorder %s244, %s245
      %p257 = scmp.eq.s32.totalorder %s32, 1
      %p258 = por %p256, %p257
      %p260 = scmp.ne.s32.totalorder %s245, %s259
      %p261 = scmp.eq.s32.totalorder %s32, 0
      %p262 = por %p260, %p261
      %s264 = sadd.s32 %s263, 1
      %p267 = scmp.eq.s32.totalorder %s26, 1
      %p268 = scmp.ne.s32.totalorder %s263, %s265
      %p269 = scmp.eq.s32.totalorder %s26, 0
      %p270 = por %p268, %p269
      %p271 = scmp.ne.s32.totalorder %s263, %s265
      %p272 = scmp.eq.s32.totalorder %s31, 1
      %p273 = por %p271, %p272
      %p274 = scmp.ne.s32.totalorder %s265, %s266
      %p275 = scmp.eq.s32.totalorder %s31, 0
      %p276 = por %p274, %p275
      %p277 = scmp.ne.s32.totalorder %s265, %s266
      %p278 = scmp.eq.s32.totalorder %s32, 1
      %p279 = por %p277, %p278
      %p281 = scmp.ne.s32.totalorder %s266, %s280
      %p282 = scmp.eq.s32.totalorder %s32, 0
      %p283 = por %p281, %p282
      %s285 = sadd.s32 %s284, 1
      %p288 = scmp.eq.s32.totalorder %s26, 1
      %p289 = scmp.ne.s32.totalorder %s284, %s286
      %p290 = scmp.eq.s32.totalorder %s26, 0
      %p291 = por %p289, %p290
      %p292 = scmp.ne.s32.totalorder %s284, %s286
      %p293 = scmp.eq.s32.totalorder %s31, 1
      %p294 = por %p292, %p293
      %p295 = scmp.ne.s32.totalorder %s286, %s287
      %p296 = scmp.eq.s32.totalorder %s31, 0
      %p297 = por %p295, %p296
      %p298 = scmp.ne.s32.totalorder %s286, %s287
      %p299 = scmp.eq.s32.totalorder %s32, 1
      %p300 = por %p298, %p299
      %p302 = scmp.ne.s32.totalorder %s287, %s301
      %p303 = scmp.eq.s32.totalorder %s32, 0
      %p304 = por %p302, %p303
      %s306 = sadd.s32 %s305, 1
      %p309 = scmp.eq.s32.totalorder %s26, 1
      %p310 = scmp.ne.s32.totalorder %s305, %s307
      %p311 = scmp.eq.s32.totalorder %s26, 0
      %p312 = por %p310, %p311
      %p313 = scmp.ne.s32.totalorder %s305, %s307
      %p314 = scmp.eq.s32.totalorder %s31, 1
      %p315 = por %p313, %p314
      %p316 = scmp.ne.s32.totalorder %s307, %s308
      %p317 = scmp.eq.s32.totalorder %s31, 0
      %p318 = por %p316, %p317
      %p319 = scmp.ne.s32.totalorder %s307, %s308
      %p320 = scmp.eq.s32.totalorder %s32, 1
      %p321 = por %p319, %p320
      %p323 = scmp.ne.s32.totalorder %s308, %s322
      %p324 = scmp.eq.s32.totalorder %s32, 0
      %p325 = por %p323, %p324
      %s326 = ssub.s32 %s33, %s45
      %s327 = ssub.s32 %s34, %s41
      %s328 = sor.u32 %s326, %s327
      %p329 = scmp.eq.s32.totalorder %s328, 0
      %s331 = sadd.s32 %s330, 1
      %s332 = scalar_select %p329, %s330, %s331
      %p335 = pneg %p329
      %p336 = scmp.eq.s32.totalorder %s26, 1
      %p337 = por %p335, %p336
      %p338 = scmp.ne.s32.totalorder %s330, %s333
      %p339 = scmp.eq.s32.totalorder %s26, 0
      %p340 = por %p338, %p339
      %p341 = scmp.ne.s32.totalorder %s330, %s333
      %p342 = scmp.eq.s32.totalorder %s31, 1
      %p343 = por %p341, %p342
      %p344 = scmp.ne.s32.totalorder %s333, %s334
      %p345 = scmp.eq.s32.totalorder %s31, 0
      %p346 = por %p344, %p345
      %p347 = scmp.ne.s32.totalorder %s333, %s334
      %p348 = scmp.eq.s32.totalorder %s32, 1
      %p349 = por %p347, %p348
      %p351 = scmp.ne.s32.totalorder %s334, %s350
      %p352 = scmp.eq.s32.totalorder %s32, 0
      %p353 = por %p351, %p352
      %p354 = scmp.le.s32.totalorder 1, %s26
      %p355 = scmp.lt.s32.totalorder %s26, 3
      %p356 = pnand %p354, %p355
      %p357 = pneg %p356
      // Predicated region
      $region9: #{temporal_block_forward.1} parent=5 // pred_check
        _
      $region10: #{temporal_block_forward.1} parent=5 // pred_check_branch
        %359 = sbr.rel (%p356) target = $region12
      $region11: #{temporal_block_forward.1} parent=5 // pred_region
        %s360 = ssub.s32 %s26, 1
        // Predicated region
        $region13: #{temporal_block_forward.1} parent=11 // pred_check
          %p361 = pneg %p87
        $region14: #{temporal_block_forward.1} parent=11 // pred_check_branch
          %363 = sbr.rel (%p361) target = $region16
        $region15: #{temporal_block_forward.1} parent=11 // pred_region
          _
        $region16: #{temporal_block_forward.1} parent=11 // pred_fallthru
          _
        // Predicated region
        $region17: #{temporal_block_forward.1} parent=11 // pred_check
          %p364 = pneg %p108
        $region18: #{temporal_block_forward.1} parent=11 // pred_check_branch
          %366 = sbr.rel (%p364) target = $region20
        $region19: #{temporal_block_forward.1} parent=11 // pred_region
          _
        $region20: #{temporal_block_forward.1} parent=11 // pred_fallthru
          _
        // Predicated region
        $region21: #{temporal_block_forward.1} parent=11 // pred_check
          %p367 = pneg %p129
        $region22: #{temporal_block_forward.1} parent=11 // pred_check_branch
          %369 = sbr.rel (%p367) target = $region24
        $region23: #{temporal_block_forward.1} parent=11 // pred_region
          _
        $region24: #{temporal_block_forward.1} parent=11 // pred_fallthru
          _
        // Predicated region
        $region25: #{temporal_block_forward.1} parent=11 // pred_check
          %p370 = pneg %p150
        $region26: #{temporal_block_forward.1} parent=11 // pred_check_branch
          %372 = sbr.rel (%p370) target = $region28
        $region27: #{temporal_block_forward.1} parent=11 // pred_region
          _
        $region28: #{temporal_block_forward.1} parent=11 // pred_fallthru
          _
        // Predicated region
        $region29: #{temporal_block_forward.1} parent=11 // pred_check
          %p373 = pneg %p171
        $region30: #{temporal_block_forward.1} parent=11 // pred_check_branch
          %375 = sbr.rel (%p373) target = $region32
        $region31: #{temporal_block_forward.1} parent=11 // pred_region
          %s377 = ssub.s32 1024, 1024
          %378 = vsyncadd [#allocation4], %s377
          %s379 = sshll.u32 [#allocation3], 4
          %s380 = int_to_ptr.vmem [resolvable:$true] %s379
          %385 = dma.hbm_to_vmem [thread:$0]  %s5, 1024, %s380, [#allocation4], 64, 64, 4
        $region32: #{temporal_block_forward.1} parent=11 // pred_fallthru
          _
        // Predicated region
        $region33: #{temporal_block_forward.1} parent=11 // pred_check
          %p386 = pneg %p192
        $region34: #{temporal_block_forward.1} parent=11 // pred_check_branch
          %388 = sbr.rel (%p386) target = $region36
        $region35: #{temporal_block_forward.1} parent=11 // pred_region
          %s390 = ssub.s32 16, 16
          %391 = vsyncadd [#allocation7], %s390
          %s393 = sshll.u32 [#allocation6], 4
          %s394 = int_to_ptr.vmem [resolvable:$true] %s393
          %396 = dma.hbm_to_vmem [thread:$0]  %s6, 16, %s394, [#allocation7]
        $region36: #{temporal_block_forward.1} parent=11 // pred_fallthru
          _
        // Predicated region
        $region37: #{temporal_block_forward.1} parent=11 // pred_check
          %p397 = pneg %p213
        $region38: #{temporal_block_forward.1} parent=11 // pred_check_branch
          %399 = sbr.rel (%p397) target = $region40
        $region39: #{temporal_block_forward.1} parent=11 // pred_region
          %s401 = ssub.s32 3072, 3072
          %402 = vsyncadd [#allocation7], %s401
          %s403 = sshll.u32 [#allocation8], 4
          %s404 = int_to_ptr.vmem [resolvable:$true] %s403
          %409 = dma.hbm_to_vmem [thread:$0]  %s7, 3072, %s404, [#allocation7], 64, 64, 4
        $region40: #{temporal_block_forward.1} parent=11 // pred_fallthru
          _
        // Predicated region
        $region41: #{temporal_block_forward.1} parent=11 // pred_check
          %p410 = pneg %p234
        $region42: #{temporal_block_forward.1} parent=11 // pred_check_branch
          %412 = sbr.rel (%p410) target = $region44
        $region43: #{temporal_block_forward.1} parent=11 // pred_region
          _
        $region44: #{temporal_block_forward.1} parent=11 // pred_fallthru
          _
        // Predicated region
        $region45: #{temporal_block_forward.1} parent=11 // pred_check
          %p413 = pneg %p255
        $region46: #{temporal_block_forward.1} parent=11 // pred_check_branch
          %415 = sbr.rel (%p413) target = $region48
        $region47: #{temporal_block_forward.1} parent=11 // pred_region
          %s417 = ssub.s32 1024, 1024
          %418 = vsyncadd [#allocation10], %s417
          %s419 = sshll.u32 [#allocation9], 4
          %s420 = int_to_ptr.vmem [resolvable:$true] %s419
          %425 = dma.hbm_to_vmem [thread:$0]  %s9, 1024, %s420, [#allocation10], 64, 64, 4
        $region48: #{temporal_block_forward.1} parent=11 // pred_fallthru
          _
        // Predicated region
        $region49: #{temporal_block_forward.1} parent=11 // pred_check
          %p426 = pneg %p276
        $region50: #{temporal_block_forward.1} parent=11 // pred_check_branch
          %428 = sbr.rel (%p426) target = $region52
        $region51: #{temporal_block_forward.1} parent=11 // pred_region
          _
        $region52: #{temporal_block_forward.1} parent=11 // pred_fallthru
          _
        // Predicated region
        $region53: #{temporal_block_forward.1} parent=11 // pred_check
          %p429 = pneg %p297
        $region54: #{temporal_block_forward.1} parent=11 // pred_check_branch
          %431 = sbr.rel (%p429) target = $region56
        $region55: #{temporal_block_forward.1} parent=11 // pred_region
          %s433 = ssub.s32 1024, 1024
          %434 = vsyncadd [#allocation10], %s433
          %s435 = sshll.u32 [#allocation11], 4
          %s436 = int_to_ptr.vmem [resolvable:$true] %s435
          %441 = dma.hbm_to_vmem [thread:$0]  %s11, 1024, %s436, [#allocation10], 64, 64, 4
        $region56: #{temporal_block_forward.1} parent=11 // pred_fallthru
          _
        // Predicated region
        $region57: #{temporal_block_forward.1} parent=11 // pred_check
          %p442 = pneg %p318
        $region58: #{temporal_block_forward.1} parent=11 // pred_check_branch
          %444 = sbr.rel (%p442) target = $region60
        $region59: #{temporal_block_forward.1} parent=11 // pred_region
          %s446 = ssub.s32 16, 16
          %447 = vsyncadd [#allocation13], %s446
          %s449 = sshll.u32 [#allocation12], 4
          %s450 = int_to_ptr.vmem [resolvable:$true] %s449
          %452 = dma.hbm_to_vmem [thread:$0]  %s12, 16, %s450, [#allocation13]
        $region60: #{temporal_block_forward.1} parent=11 // pred_fallthru
          _
      $region12: #{temporal_block_forward.1} parent=5 // pred_fallthru
        _
      %p453 = scmp.lt.s32.totalorder %s26, 2
      // Predicated region
      $region61: #{temporal_block_forward.1} parent=5 // pred_check
        %p454 = pneg %p453
      $region62: #{temporal_block_forward.1} parent=5 // pred_check_branch
        %456 = sbr.rel (%p454) target = $region64
      $region63: #{temporal_block_forward.1} parent=5 // pred_region
        // Predicated region
        $region65: #{temporal_block_forward.1} parent=63 // pred_check
          %p457 = pneg %p60
        $region66: #{temporal_block_forward.1} parent=63 // pred_check_branch
          %459 = sbr.rel (%p457) target = $region68
        $region67: #{temporal_block_forward.1} parent=63 // pred_region
          %s460 = smul.u32 2, %s34
          %p461 = scmp.lt.s32.totalorder %s33, 1
          %s462 = scalar_select %p461, %s33, 1
          %p463 = scmp.lt.s32.totalorder %s460, 1
          %s464 = scalar_select %p463, %s460, 1
          %s465 = smul.addr %s462, 2
          %s466 = sadd.s32 %s464, %s465
          %s467 = smul.addr %s466, 8
          %s468 = scalar_lea.vmem %s0, %s467
          %s469 = smul.u32 2, %s34
        $region68: #{temporal_block_forward.1} parent=63 // pred_fallthru
          _
      $region64: #{temporal_block_forward.1} parent=5 // pred_fallthru
        _
      %p470 = scmp.le.s32.totalorder 1, %s26
      %p471 = scmp.lt.s32.totalorder %s26, 3
      %p472 = pnand %p470, %p471
      %p473 = pneg %p472
      // Predicated region
      $region69: #{temporal_block_forward.1} parent=5 // pred_check
        _
      $region70: #{temporal_block_forward.1} parent=5 // pred_check_branch
        %475 = sbr.rel (%p472) target = $region72
      $region71: #{temporal_block_forward.1} parent=5 // pred_region
        %s476 = ssub.s32 %s26, 1
        // Predicated region
        $region73: #{temporal_block_forward.1} parent=71 // pred_check
          %p477 = pneg %p171
        $region74: #{temporal_block_forward.1} parent=71 // pred_check_branch
          %479 = sbr.rel (%p477) target = $region76
        $region75: #{temporal_block_forward.1} parent=71 // pred_region
          %480 = dma.done [#allocation4], 1024
        $region76: #{temporal_block_forward.1} parent=71 // pred_fallthru
          _
        // Predicated region
        $region77: #{temporal_block_forward.1} parent=71 // pred_check
          %p481 = pneg %p192
        $region78: #{temporal_block_forward.1} parent=71 // pred_check_branch
          %483 = sbr.rel (%p481) target = $region80
        $region79: #{temporal_block_forward.1} parent=71 // pred_region
          %484 = dma.done [#allocation7], 16
        $region80: #{temporal_block_forward.1} parent=71 // pred_fallthru
          _
        // Predicated region
        $region81: #{temporal_block_forward.1} parent=71 // pred_check
          %p485 = pneg %p213
        $region82: #{temporal_block_forward.1} parent=71 // pred_check_branch
          %487 = sbr.rel (%p485) target = $region84
        $region83: #{temporal_block_forward.1} parent=71 // pred_region
          %488 = dma.done [#allocation7], 3072
        $region84: #{temporal_block_forward.1} parent=71 // pred_fallthru
          _
        // Predicated region
        $region85: #{temporal_block_forward.1} parent=71 // pred_check
          %p489 = pneg %p255
        $region86: #{temporal_block_forward.1} parent=71 // pred_check_branch
          %491 = sbr.rel (%p489) target = $region88
        $region87: #{temporal_block_forward.1} parent=71 // pred_region
          %492 = dma.done [#allocation10], 1024
        $region88: #{temporal_block_forward.1} parent=71 // pred_fallthru
          _
        // Predicated region
        $region89: #{temporal_block_forward.1} parent=71 // pred_check
          %p493 = pneg %p297
        $region90: #{temporal_block_forward.1} parent=71 // pred_check_branch
          %495 = sbr.rel (%p493) target = $region92
        $region91: #{temporal_block_forward.1} parent=71 // pred_region
          %496 = dma.done [#allocation10], 1024
        $region92: #{temporal_block_forward.1} parent=71 // pred_fallthru
          _
        // Predicated region
        $region93: #{temporal_block_forward.1} parent=71 // pred_check
          %p497 = pneg %p318
        $region94: #{temporal_block_forward.1} parent=71 // pred_check_branch
          %499 = sbr.rel (%p497) target = $region96
        $region95: #{temporal_block_forward.1} parent=71 // pred_region
          %500 = dma.done [#allocation13], 16
        $region96: #{temporal_block_forward.1} parent=71 // pred_fallthru
          _
        %s501 = smul.u32 2, %s36
        %p502 = scmp.lt.s32.totalorder %s35, 1
        %s503 = scalar_select %p502, %s35, 1
        %p504 = scmp.lt.s32.totalorder %s501, 1
        %s505 = scalar_select %p504, %s501, 1
        %s506 = smul.addr %s503, 2
        %s507 = sadd.s32 %s505, %s506
        %s508 = smul.addr %s507, 8
        %s509 = scalar_lea.vmem %s0, %s508
        %p510 = pneg %p66
        %p511 = pneg %p63
        %p512 = pneg %p87
        %p513 = pneg %p84
        %p514 = pneg %p108
        %p515 = pneg %p105
        %p516 = pneg %p129
        %p517 = pneg %p126
        %p518 = pneg %p150
        %p519 = pneg %p147
        %p520 = pneg %p171
        %p521 = pneg %p168
        %p522 = pneg %p192
        %p523 = pneg %p189
        %p524 = pneg %p213
        %p525 = pneg %p210
        %p526 = pneg %p234
        %p527 = pneg %p231
        %p528 = pneg %p255
        %p529 = pneg %p252
        %p530 = pneg %p276
        %p531 = pneg %p273
        %p532 = pneg %p297
        %p533 = pneg %p294
        %p534 = pneg %p318
        %p535 = pneg %p315
        %p536 = pneg %p346
        %p537 = pneg %p343
        %s538 = sand.u32 %s333, 1
        %s539 = scalar_lea.sflag [#allocation5], %s538
        %s540 = sand.u32 %s333, 1
        %s541 = scalar_lea.vmem [#allocation14], %s540
        %s542 = smul.u32 2, %s36
        %p543 = scmp.lt.s32.totalorder %s35, 1
        %s544 = scalar_select %p543, %s35, 1
        %p545 = scmp.lt.s32.totalorder %s542, 1
        %s546 = scalar_select %p545, %s542, 1
        %s547 = smul.addr %s544, 2
        %s548 = sadd.s32 %s546, %s547
        %s549 = smul.addr %s548, 8
        %s550 = scalar_lea.vmem %s0, %s549
        %s551 = smul.u32 2, %s36
        %v553 = vld [vmem:[%s550] sm:$0xff]
        %v554 = vld [vmem:[%s550 + $0x8] sm:$0x1]
        %v555 = vpack.c.bf16 %v554, %v553
        %v556 = vld [vmem:[%s1] sm:$0xf]
        %v557 = vld [vmem:[%s1 + $0x4] sm:$0xf]
        %v558 = vld [vmem:[%s1 + $0x8] sm:$0xf]
        %v559 = vld [vmem:[%s2] sm:$0x1]
        %v561 = vlaneseq
        %v562 = vshrl.u32 %v561, 7
        %v563 = vsub.s32 0, %v562
        %v564 = vrot.slane %v559, %v563
        %v569 = vunpack.c.l.b16 %v556
        %v570 = vunpack.c.l.b16 %v557
        %v571 = vunpack.c.l.b16 %v558
        %v572 = vpack.c.b16 %v570, %v569
        %v573 = vpack.c.b16 %v571, %v571
        %vm575 = vcmask 195584
        %v577 = vsel %vm575, %v555, 0
        %vm579 = vcmask 1043456
        %v581 = vsel %vm579, %v573, 0
        %583 = vmatprep.subr.bf16.mxu0 0
        %584 = vmatpush1.bf16.msra.mxu0 %v572
        %585 = vmatprep.subr.bf16.mxu0 0
        %586 = vmatpush1.bf16.msra.mxu0 %v581
        %587 = vmatprep.subr.bf16.mxu0 0
        %588 = vmatpush1.bf16.msra.mxu0 0
        %589 = vmatprep.subr.bf16.mxu0 0
        %590 = vmatpush1.bf16.msra.mxu0 0
        %591 = vmatprep.subr.bf16.mxu0 0
        %592 = vmatpush1.bf16.msra.mxu0 0
        %593 = vmatprep.subr.bf16.mxu0 0
        %594 = vmatpush1.bf16.msra.mxu0 0
        %595 = vmatprep.subr.bf16.mxu0 0
        %596 = vmatpush1.bf16.msra.mxu0 0
        %597 = vmatprep.subr.bf16.mxu0 0
        %598 = vmatpush1.bf16.msra.mxu0 0
        %599 = vmatprep.subr.bf16.mxu0 0
        %600 = vmatpush1.bf16.msra.mxu0 0
        %601 = vmatprep.subr.bf16.mxu0 0
        %602 = vmatpush1.bf16.msra.mxu0 0
        %603 = vmatprep.subr.bf16.mxu0 0
        %604 = vmatpush1.bf16.msra.mxu0 0
        %605 = vmatprep.subr.bf16.mxu0 0
        %606 = vmatpush1.bf16.msra.mxu0 0
        %607 = vmatprep.subr.bf16.mxu0 0
        %608 = vmatpush1.bf16.msra.mxu0 0
        %609 = vmatprep.subr.bf16.mxu0 0
        %610 = vmatpush1.bf16.msra.mxu0 0
        %611 = vmatprep.subr.bf16.mxu0 0
        %612 = vmatpush1.bf16.msra.mxu0 0
        %613 = vmatprep.subr.bf16.mxu0 0
        %614 = vmatpush1.bf16.msra.mxu0 0
        %615 = vmatprep.mubr.bf16.mxu0 0
        %616 = vmatmul.mubr.bf16.gmra.mrb[0].mxu0 %v577
        %v617 = vpop.f32.mrb[0].mxu0
        %v618 = vadd.f32 %v564, %v617
        %v619 = vpop.f32.mrb[0].mxu0
        %v620 = vpop.f32.mrb[0].mxu0
        %v621 = vadd.f32 %v564, %v620
        %v622 = vpop.f32.mrb[0].mxu0
        %623 = vdwg.mxu0
        %v624 = vmul.f32 %v618, 0.2
        %v625 = vmul.f32 %v621, 0.2
        %v626 = vmax.f32 %v618, %v624
        %v627 = vmax.f32 %v621, %v625
        %628 = vst [vmem:[#allocation2] sm:$0xff] %v626
        %629 = vst [vmem:[#allocation2 + $0x8] sm:$0x1] %v627
        %v630 = vld [vmem:[#allocation2] ss:$3 sm:$0x7]
        %v631 = vpack.c.bf16 %v630, %v630
        %v632 = vld [vmem:[%s3] sm:$0xf]
        %v633 = vld [vmem:[%s3 + $0x4] sm:$0xf]
        %v634 = vld [vmem:[%s3 + $0x8] sm:$0xf]
        %v635 = vld [vmem:[%s3 + $0xc] sm:$0xf]
        %v636 = vld [vmem:[%s3 + $0x10] sm:$0xf]
        %v637 = vld [vmem:[%s3 + $0x14] sm:$0xf]
        %v638 = vld [vmem:[%s3 + $0x18] sm:$0xf]
        %v639 = vld [vmem:[%s3 + $0x1c] sm:$0xf]
        %v640 = vld [vmem:[%s3 + $0x20] sm:$0xf]
        %v641 = vld [vmem:[%s3 + $0x24] sm:$0xf]
        %v642 = vld [vmem:[%s3 + $0x28] sm:$0xf]
        %v643 = vld [vmem:[%s3 + $0x2c] sm:$0xf]
        %v644 = vld [vmem:[%s3 + $0x30] sm:$0xf]
        %v645 = vld [vmem:[%s3 + $0x34] sm:$0xf]
        %v646 = vld [vmem:[%s3 + $0x38] sm:$0xf]
        %v647 = vld [vmem:[%s3 + $0x3c] sm:$0xf]
        %s648 = scalar_lea.vmem [#allocation2], 1
        %v649 = vld [vmem:[%s648] ss:$3 sm:$0x7]
        %v650 = vpack.c.bf16 %v649, %v649
        %s651 = scalar_lea.vmem %s3, 64
        %v652 = vld [vmem:[%s651] sm:$0xf]
        %v653 = vld [vmem:[%s651 + $0x4] sm:$0xf]
        %v654 = vld [vmem:[%s651 + $0x8] sm:$0xf]
        %v655 = vld [vmem:[%s651 + $0xc] sm:$0xf]
        %v656 = vld [vmem:[%s651 + $0x10] sm:$0xf]
        %v657 = vld [vmem:[%s651 + $0x14] sm:$0xf]
        %v658 = vld [vmem:[%s651 + $0x18] sm:$0xf]
        %v659 = vld [vmem:[%s651 + $0x1c] sm:$0xf]
        %v660 = vld [vmem:[%s651 + $0x20] sm:$0xf]
        %v661 = vld [vmem:[%s651 + $0x24] sm:$0xf]
        %v662 = vld [vmem:[%s651 + $0x28] sm:$0xf]
        %v663 = vld [vmem:[%s651 + $0x2c] sm:$0xf]
        %v664 = vld [vmem:[%s651 + $0x30] sm:$0xf]
        %v665 = vld [vmem:[%s651 + $0x34] sm:$0xf]
        %v666 = vld [vmem:[%s651 + $0x38] sm:$0xf]
        %v667 = vld [vmem:[%s651 + $0x3c] sm:$0xf]
        %v684 = vunpack.c.l.b16 %v652
        %v685 = vunpack.c.l.b16 %v653
        %v686 = vunpack.c.l.b16 %v654
        %v687 = vunpack.c.l.b16 %v655
        %v688 = vunpack.c.l.b16 %v656
        %v689 = vunpack.c.l.b16 %v657
        %v690 = vunpack.c.l.b16 %v658
        %v691 = vunpack.c.l.b16 %v659
        %v692 = vunpack.c.l.b16 %v660
        %v693 = vunpack.c.l.b16 %v661
        %v694 = vunpack.c.l.b16 %v662
        %v695 = vunpack.c.l.b16 %v663
        %v696 = vunpack.c.l.b16 %v664
        %v697 = vunpack.c.l.b16 %v665
        %v698 = vunpack.c.l.b16 %v666
        %v699 = vunpack.c.l.b16 %v667
        %v700 = vpack.c.b16 %v685, %v684
        %v701 = vpack.c.b16 %v687, %v686
        %v702 = vpack.c.b16 %v689, %v688
        %v703 = vpack.c.b16 %v691, %v690
        %v704 = vpack.c.b16 %v693, %v692
        %v705 = vpack.c.b16 %v695, %v694
        %v706 = vpack.c.b16 %v697, %v696
        %v707 = vpack.c.b16 %v699, %v698
        %716 = vmatprep.subr.bf16.mxu0 0
        %717 = vmatpush1.bf16.msra.mxu0 %v700
        %718 = vmatprep.subr.bf16.mxu0 0
        %719 = vmatpush1.bf16.msra.mxu0 %v701
        %720 = vmatprep.subr.bf16.mxu0 0
        %721 = vmatpush1.bf16.msra.mxu0 %v702
        %722 = vmatprep.subr.bf16.mxu0 0
        %723 = vmatpush1.bf16.msra.mxu0 %v703
        %724 = vmatprep.subr.bf16.mxu0 0
        %725 = vmatpush1.bf16.msra.mxu0 %v704
        %726 = vmatprep.subr.bf16.mxu0 0
        %727 = vmatpush1.bf16.msra.mxu0 %v705
        %728 = vmatprep.subr.bf16.mxu0 0
        %729 = vmatpush1.bf16.msra.mxu0 %v706
        %730 = vmatprep.subr.bf16.mxu0 0
        %731 = vmatpush1.bf16.msra.mxu0 %v707
        %732 = vmatprep.subr.bf16.mxu0 0
        %733 = vmatpush1.bf16.msra.mxu0 0
        %734 = vmatprep.subr.bf16.mxu0 0
        %735 = vmatpush1.bf16.msra.mxu0 0
        %736 = vmatprep.subr.bf16.mxu0 0
        %737 = vmatpush1.bf16.msra.mxu0 0
        %738 = vmatprep.subr.bf16.mxu0 0
        %739 = vmatpush1.bf16.msra.mxu0 0
        %740 = vmatprep.subr.bf16.mxu0 0
        %741 = vmatpush1.bf16.msra.mxu0 0
        %742 = vmatprep.subr.bf16.mxu0 0
        %743 = vmatpush1.bf16.msra.mxu0 0
        %744 = vmatprep.subr.bf16.mxu0 0
        %745 = vmatpush1.bf16.msra.mxu0 0
        %746 = vmatprep.subr.bf16.mxu0 0
        %747 = vmatpush1.bf16.msra.mxu0 0
        %748 = vmatprep.mubr.bf16.mxu0 0
        %749 = vmatmul.mubr.bf16.gmra.mrb[0].mxu0 %v650
        %v750 = vpop.f32.mrb[0].mxu0
        %v751 = vadd.f32 0.0, %v750
        %v752 = vpop.f32.mrb[0].mxu0
        %v753 = vpop.f32.mrb[0].mxu0
        %v754 = vpop.f32.mrb[0].mxu0
        %755 = vdwg.mxu0
        %v772 = vunpack.c.l.b16 %v632
        %v773 = vunpack.c.l.b16 %v633
        %v774 = vunpack.c.l.b16 %v634
        %v775 = vunpack.c.l.b16 %v635
        %v776 = vunpack.c.l.b16 %v636
        %v777 = vunpack.c.l.b16 %v637
        %v778 = vunpack.c.l.b16 %v638
        %v779 = vunpack.c.l.b16 %v639
        %v780 = vunpack.c.l.b16 %v640
        %v781 = vunpack.c.l.b16 %v641
        %v782 = vunpack.c.l.b16 %v642
        %v783 = vunpack.c.l.b16 %v643
        %v784 = vunpack.c.l.b16 %v644
        %v785 = vunpack.c.l.b16 %v645
        %v786 = vunpack.c.l.b16 %v646
        %v787 = vunpack.c.l.b16 %v647
        %v788 = vpack.c.b16 %v773, %v772
        %v789 = vpack.c.b16 %v775, %v774
        %v790 = vpack.c.b16 %v777, %v776
        %v791 = vpack.c.b16 %v779, %v778
        %v792 = vpack.c.b16 %v781, %v780
        %v793 = vpack.c.b16 %v783, %v782
        %v794 = vpack.c.b16 %v785, %v784
        %v795 = vpack.c.b16 %v787, %v786
        %804 = vmatprep.subr.bf16.mxu0 0
        %805 = vmatpush1.bf16.msra.mxu0 %v788
        %806 = vmatprep.subr.bf16.mxu0 0
        %807 = vmatpush1.bf16.msra.mxu0 %v789
        %808 = vmatprep.subr.bf16.mxu0 0
        %809 = vmatpush1.bf16.msra.mxu0 %v790
        %810 = vmatprep.subr.bf16.mxu0 0
        %811 = vmatpush1.bf16.msra.mxu0 %v791
        %812 = vmatprep.subr.bf16.mxu0 0
        %813 = vmatpush1.bf16.msra.mxu0 %v792
        %814 = vmatprep.subr.bf16.mxu0 0
        %815 = vmatpush1.bf16.msra.mxu0 %v793
        %816 = vmatprep.subr.bf16.mxu0 0
        %817 = vmatpush1.bf16.msra.mxu0 %v794
        %818 = vmatprep.subr.bf16.mxu0 0
        %819 = vmatpush1.bf16.msra.mxu0 %v795
        %820 = vmatprep.subr.bf16.mxu0 0
        %821 = vmatpush1.bf16.msra.mxu0 0
        %822 = vmatprep.subr.bf16.mxu0 0
        %823 = vmatpush1.bf16.msra.mxu0 0
        %824 = vmatprep.subr.bf16.mxu0 0
        %825 = vmatpush1.bf16.msra.mxu0 0
        %826 = vmatprep.subr.bf16.mxu0 0
        %827 = vmatpush1.bf16.msra.mxu0 0
        %828 = vmatprep.subr.bf16.mxu0 0
        %829 = vmatpush1.bf16.msra.mxu0 0
        %830 = vmatprep.subr.bf16.mxu0 0
        %831 = vmatpush1.bf16.msra.mxu0 0
        %832 = vmatprep.subr.bf16.mxu0 0
        %833 = vmatpush1.bf16.msra.mxu0 0
        %834 = vmatprep.subr.bf16.mxu0 0
        %835 = vmatpush1.bf16.msra.mxu0 0
        %836 = vmatprep.mubr.bf16.mxu0 0
        %837 = vmatmul.mubr.bf16.gmra.mrb[0].mxu0 %v631
        %v838 = vpop.f32.mrb[0].mxu0
        %v839 = vadd.f32 %v751, %v838
        %v840 = vpop.f32.mrb[0].mxu0
        %v841 = vpop.f32.mrb[0].mxu0
        %v842 = vpop.f32.mrb[0].mxu0
        %843 = vdwg.mxu0
        %s844 = scalar_lea.vmem [#allocation2], 2
        %v845 = vld [vmem:[%s844] ss:$3 sm:$0x7]
        %v846 = vpack.c.bf16 %v845, %v845
        %s847 = scalar_lea.vmem %s3, 128
        %v848 = vld [vmem:[%s847] sm:$0xf]
        %v849 = vld [vmem:[%s847 + $0x4] sm:$0xf]
        %v850 = vld [vmem:[%s847 + $0x8] sm:$0xf]
        %v851 = vld [vmem:[%s847 + $0xc] sm:$0xf]
        %v852 = vld [vmem:[%s847 + $0x10] sm:$0xf]
        %v853 = vld [vmem:[%s847 + $0x14] sm:$0xf]
        %v854 = vld [vmem:[%s847 + $0x18] sm:$0xf]
        %v855 = vld [vmem:[%s847 + $0x1c] sm:$0xf]
        %v856 = vld [vmem:[%s847 + $0x20] sm:$0xf]
        %v857 = vld [vmem:[%s847 + $0x24] sm:$0xf]
        %v858 = vld [vmem:[%s847 + $0x28] sm:$0xf]
        %v859 = vld [vmem:[%s847 + $0x2c] sm:$0xf]
        %v860 = vld [vmem:[%s847 + $0x30] sm:$0xf]
        %v861 = vld [vmem:[%s847 + $0x34] sm:$0xf]
        %v862 = vld [vmem:[%s847 + $0x38] sm:$0xf]
        %v863 = vld [vmem:[%s847 + $0x3c] sm:$0xf]
        %v880 = vunpack.c.l.b16 %v848
        %v881 = vunpack.c.l.b16 %v849
        %v882 = vunpack.c.l.b16 %v850
        %v883 = vunpack.c.l.b16 %v851
        %v884 = vunpack.c.l.b16 %v852
        %v885 = vunpack.c.l.b16 %v853
        %v886 = vunpack.c.l.b16 %v854
        %v887 = vunpack.c.l.b16 %v855
        %v888 = vunpack.c.l.b16 %v856
        %v889 = vunpack.c.l.b16 %v857
        %v890 = vunpack.c.l.b16 %v858
        %v891 = vunpack.c.l.b16 %v859
        %v892 = vunpack.c.l.b16 %v860
        %v893 = vunpack.c.l.b16 %v861
        %v894 = vunpack.c.l.b16 %v862
        %v895 = vunpack.c.l.b16 %v863
        %v896 = vpack.c.b16 %v881, %v880
        %v897 = vpack.c.b16 %v883, %v882
        %v898 = vpack.c.b16 %v885, %v884
        %v899 = vpack.c.b16 %v887, %v886
        %v900 = vpack.c.b16 %v889, %v888
        %v901 = vpack.c.b16 %v891, %v890
        %v902 = vpack.c.b16 %v893, %v892
        %v903 = vpack.c.b16 %v895, %v894
        %912 = vmatprep.subr.bf16.mxu0 0
        %913 = vmatpush1.bf16.msra.mxu0 %v896
        %914 = vmatprep.subr.bf16.mxu0 0
        %915 = vmatpush1.bf16.msra.mxu0 %v897
        %916 = vmatprep.subr.bf16.mxu0 0
        %917 = vmatpush1.bf16.msra.mxu0 %v898
        %918 = vmatprep.subr.bf16.mxu0 0
        %919 = vmatpush1.bf16.msra.mxu0 %v899
        %920 = vmatprep.subr.bf16.mxu0 0
        %921 = vmatpush1.bf16.msra.mxu0 %v900
        %922 = vmatprep.subr.bf16.mxu0 0
        %923 = vmatpush1.bf16.msra.mxu0 %v901
        %924 = vmatprep.subr.bf16.mxu0 0
        %925 = vmatpush1.bf16.msra.mxu0 %v902
        %926 = vmatprep.subr.bf16.mxu0 0
        %927 = vmatpush1.bf16.msra.mxu0 %v903
        %928 = vmatprep.subr.bf16.mxu0 0
        %929 = vmatpush1.bf16.msra.mxu0 0
        %930 = vmatprep.subr.bf16.mxu0 0
        %931 = vmatpush1.bf16.msra.mxu0 0
        %932 = vmatprep.subr.bf16.mxu0 0
        %933 = vmatpush1.bf16.msra.mxu0 0
        %934 = vmatprep.subr.bf16.mxu0 0
        %935 = vmatpush1.bf16.msra.mxu0 0
        %936 = vmatprep.subr.bf16.mxu0 0
        %937 = vmatpush1.bf16.msra.mxu0 0
        %938 = vmatprep.subr.bf16.mxu0 0
        %939 = vmatpush1.bf16.msra.mxu0 0
        %940 = vmatprep.subr.bf16.mxu0 0
        %941 = vmatpush1.bf16.msra.mxu0 0
        %942 = vmatprep.subr.bf16.mxu0 0
        %943 = vmatpush1.bf16.msra.mxu0 0
        %944 = vmatprep.mubr.bf16.mxu0 0
        %945 = vmatmul.mubr.bf16.gmra.mrb[0].mxu0 %v846
        %v946 = vpop.f32.mrb[0].mxu0
        %v947 = vadd.f32 0.0, %v946
        %v948 = vpop.f32.mrb[0].mxu0
        %v949 = vpop.f32.mrb[0].mxu0
        %v950 = vpop.f32.mrb[0].mxu0
        %951 = vdwg.mxu0
        %v952 = vadd.f32 %v839, %v947
        %v953 = vld [vmem:[%s4] sm:$0x1]
        %v955 = vlaneseq
        %v956 = vshrl.u32 %v955, 7
        %v957 = vsub.s32 0, %v956
        %v958 = vrot.slane %v953, %v957
        %v960 = vadd.f32 %v952, %v958
        %v961 = vmul.f32 %v960, 0.2
        %v962 = vmax.f32 %v960, %v961
        %v963 = vpack.c.bf16 %v962, %v962
        %v964 = vld [vmem:[#allocation3] sm:$0xf]
        %v965 = vld [vmem:[#allocation3 + $0x4] sm:$0xf]
        %v966 = vld [vmem:[#allocation3 + $0x8] sm:$0xf]
        %v967 = vld [vmem:[#allocation3 + $0xc] sm:$0xf]
        %v968 = vld [vmem:[#allocation3 + $0x10] sm:$0xf]
        %v969 = vld [vmem:[#allocation3 + $0x14] sm:$0xf]
        %v970 = vld [vmem:[#allocation3 + $0x18] sm:$0xf]
        %v971 = vld [vmem:[#allocation3 + $0x1c] sm:$0xf]
        %v972 = vld [vmem:[#allocation3 + $0x20] sm:$0xf]
        %v973 = vld [vmem:[#allocation3 + $0x24] sm:$0xf]
        %v974 = vld [vmem:[#allocation3 + $0x28] sm:$0xf]
        %v975 = vld [vmem:[#allocation3 + $0x2c] sm:$0xf]
        %v976 = vld [vmem:[#allocation3 + $0x30] sm:$0xf]
        %v977 = vld [vmem:[#allocation3 + $0x34] sm:$0xf]
        %v978 = vld [vmem:[#allocation3 + $0x38] sm:$0xf]
        %v979 = vld [vmem:[#allocation3 + $0x3c] sm:$0xf]
        %v980 = vld [vmem:[#allocation6] sm:$0x1]
        %v982 = vlaneseq
        %v983 = vshrl.u32 %v982, 7
        %v984 = vsub.s32 0, %v983
        %v985 = vrot.slane %v980, %v984
        %v1003 = vunpack.c.l.b16 %v964
        %v1004 = vunpack.c.l.b16 %v965
        %v1005 = vunpack.c.l.b16 %v966
        %v1006 = vunpack.c.l.b16 %v967
        %v1007 = vunpack.c.l.b16 %v968
        %v1008 = vunpack.c.l.b16 %v969
        %v1009 = vunpack.c.l.b16 %v970
        %v1010 = vunpack.c.l.b16 %v971
        %v1011 = vunpack.c.l.b16 %v972
        %v1012 = vunpack.c.l.b16 %v973
        %v1013 = vunpack.c.l.b16 %v974
        %v1014 = vunpack.c.l.b16 %v975
        %v1015 = vunpack.c.l.b16 %v976
        %v1016 = vunpack.c.l.b16 %v977
        %v1017 = vunpack.c.l.b16 %v978
        %v1018 = vunpack.c.l.b16 %v979
        %v1019 = vpack.c.b16 %v1004, %v1003
        %v1020 = vpack.c.b16 %v1006, %v1005
        %v1021 = vpack.c.b16 %v1008, %v1007
        %v1022 = vpack.c.b16 %v1010, %v1009
        %v1023 = vpack.c.b16 %v1012, %v1011
        %v1024 = vpack.c.b16 %v1014, %v1013
        %v1025 = vpack.c.b16 %v1016, %v1015
        %v1026 = vpack.c.b16 %v1018, %v1017
        %1035 = vmatprep.subr.bf16.mxu0 0
        %1036 = vmatpush1.bf16.msra.mxu0 %v1019
        %1037 = vmatprep.subr.bf16.mxu0 0
        %1038 = vmatpush1.bf16.msra.mxu0 %v1020
        %1039 = vmatprep.subr.bf16.mxu0 0
        %1040 = vmatpush1.bf16.msra.mxu0 %v1021
        %1041 = vmatprep.subr.bf16.mxu0 0
        %1042 = vmatpush1.bf16.msra.mxu0 %v1022
        %1043 = vmatprep.subr.bf16.mxu0 0
        %1044 = vmatpush1.bf16.msra.mxu0 %v1023
        %1045 = vmatprep.subr.bf16.mxu0 0
        %1046 = vmatpush1.bf16.msra.mxu0 %v1024
        %1047 = vmatprep.subr.bf16.mxu0 0
        %1048 = vmatpush1.bf16.msra.mxu0 %v1025
        %1049 = vmatprep.subr.bf16.mxu0 0
        %1050 = vmatpush1.bf16.msra.mxu0 %v1026
        %1051 = vmatprep.subr.bf16.mxu0 0
        %1052 = vmatpush1.bf16.msra.mxu0 0
        %1053 = vmatprep.subr.bf16.mxu0 0
        %1054 = vmatpush1.bf16.msra.mxu0 0
        %1055 = vmatprep.subr.bf16.mxu0 0
        %1056 = vmatpush1.bf16.msra.mxu0 0
        %1057 = vmatprep.subr.bf16.mxu0 0
        %1058 = vmatpush1.bf16.msra.mxu0 0
        %1059 = vmatprep.subr.bf16.mxu0 0
        %1060 = vmatpush1.bf16.msra.mxu0 0
        %1061 = vmatprep.subr.bf16.mxu0 0
        %1062 = vmatpush1.bf16.msra.mxu0 0
        %1063 = vmatprep.subr.bf16.mxu0 0
        %1064 = vmatpush1.bf16.msra.mxu0 0
        %1065 = vmatprep.subr.bf16.mxu0 0
        %1066 = vmatpush1.bf16.msra.mxu0 0
        %1067 = vmatprep.mubr.bf16.mxu0 0
        %1068 = vmatmul.mubr.bf16.gmra.mrb[0].mxu0 %v963
        %v1069 = vpop.f32.mrb[0].mxu0
        %v1070 = vadd.f32 %v985, %v1069
        %v1071 = vpop.f32.mrb[0].mxu0
        %v1072 = vpop.f32.mrb[0].mxu0
        %v1073 = vpop.f32.mrb[0].mxu0
        %1074 = vdwg.mxu0
        %v1075 = vmul.f32 %v1070, 0.2
        %v1076 = vmax.f32 %v1070, %v1075
        %v1077 = vadd.f32 %v649, %v1076
        %1078 = vst [vmem:[#allocation2] sm:$0x7] %v1077
        %v1079 = vld [vmem:[#allocation2] ss:$3 sm:$0x1]
        %v1080 = vpack.c.bf16 %v1079, %v1079
        %v1081 = vld [vmem:[#allocation8] sm:$0xf]
        %v1082 = vld [vmem:[#allocation8 + $0x4] sm:$0xf]
        %v1083 = vld [vmem:[#allocation8 + $0x8] sm:$0xf]
        %v1084 = vld [vmem:[#allocation8 + $0xc] sm:$0xf]
        %v1085 = vld [vmem:[#allocation8 + $0x10] sm:$0xf]
        %v1086 = vld [vmem:[#allocation8 + $0x14] sm:$0xf]
        %v1087 = vld [vmem:[#allocation8 + $0x18] sm:$0xf]
        %v1088 = vld [vmem:[#allocation8 + $0x1c] sm:$0xf]
        %v1089 = vld [vmem:[#allocation8 + $0x20] sm:$0xf]
        %v1090 = vld [vmem:[#allocation8 + $0x24] sm:$0xf]
        %v1091 = vld [vmem:[#allocation8 + $0x28] sm:$0xf]
        %v1092 = vld [vmem:[#allocation8 + $0x2c] sm:$0xf]
        %v1093 = vld [vmem:[#allocation8 + $0x30] sm:$0xf]
        %v1094 = vld [vmem:[#allocation8 + $0x34] sm:$0xf]
        %v1095 = vld [vmem:[#allocation8 + $0x38] sm:$0xf]
        %v1096 = vld [vmem:[#allocation8 + $0x3c] sm:$0xf]
        %v1097 = vld [vmem:[%s648] ss:$3 sm:$0x1]
        %v1098 = vpack.c.bf16 %v1097, %v1097
        %s1099 = scalar_lea.vmem [#allocation8], 64
        %v1100 = vld [vmem:[%s1099] sm:$0xf]
        %v1101 = vld [vmem:[%s1099 + $0x4] sm:$0xf]
        %v1102 = vld [vmem:[%s1099 + $0x8] sm:$0xf]
        %v1103 = vld [vmem:[%s1099 + $0xc] sm:$0xf]
        %v1104 = vld [vmem:[%s1099 + $0x10] sm:$0xf]
        %v1105 = vld [vmem:[%s1099 + $0x14] sm:$0xf]
        %v1106 = vld [vmem:[%s1099 + $0x18] sm:$0xf]
        %v1107 = vld [vmem:[%s1099 + $0x1c] sm:$0xf]
        %v1108 = vld [vmem:[%s1099 + $0x20] sm:$0xf]
        %v1109 = vld [vmem:[%s1099 + $0x24] sm:$0xf]
        %v1110 = vld [vmem:[%s1099 + $0x28] sm:$0xf]
        %v1111 = vld [vmem:[%s1099 + $0x2c] sm:$0xf]
        %v1112 = vld [vmem:[%s1099 + $0x30] sm:$0xf]
        %v1113 = vld [vmem:[%s1099 + $0x34] sm:$0xf]
        %v1114 = vld [vmem:[%s1099 + $0x38] sm:$0xf]
        %v1115 = vld [vmem:[%s1099 + $0x3c] sm:$0xf]
        %v1132 = vunpack.c.l.b16 %v1100
        %v1133 = vunpack.c.l.b16 %v1101
        %v1134 = vunpack.c.l.b16 %v1102
        %v1135 = vunpack.c.l.b16 %v1103
        %v1136 = vunpack.c.l.b16 %v1104
        %v1137 = vunpack.c.l.b16 %v1105
        %v1138 = vunpack.c.l.b16 %v1106
        %v1139 = vunpack.c.l.b16 %v1107
        %v1140 = vunpack.c.l.b16 %v1108
        %v1141 = vunpack.c.l.b16 %v1109
        %v1142 = vunpack.c.l.b16 %v1110
        %v1143 = vunpack.c.l.b16 %v1111
        %v1144 = vunpack.c.l.b16 %v1112
        %v1145 = vunpack.c.l.b16 %v1113
        %v1146 = vunpack.c.l.b16 %v1114
        %v1147 = vunpack.c.l.b16 %v1115
        %v1148 = vpack.c.b16 %v1133, %v1132
        %v1149 = vpack.c.b16 %v1135, %v1134
        %v1150 = vpack.c.b16 %v1137, %v1136
        %v1151 = vpack.c.b16 %v1139, %v1138
        %v1152 = vpack.c.b16 %v1141, %v1140
        %v1153 = vpack.c.b16 %v1143, %v1142
        %v1154 = vpack.c.b16 %v1145, %v1144
        %v1155 = vpack.c.b16 %v1147, %v1146
        %1164 = vmatprep.subr.bf16.mxu0 0
        %1165 = vmatpush1.bf16.msra.mxu0 %v1148
        %1166 = vmatprep.subr.bf16.mxu0 0
        %1167 = vmatpush1.bf16.msra.mxu0 %v1149
        %1168 = vmatprep.subr.bf16.mxu0 0
        %1169 = vmatpush1.bf16.msra.mxu0 %v1150
        %1170 = vmatprep.subr.bf16.mxu0 0
        %1171 = vmatpush1.bf16.msra.mxu0 %v1151
        %1172 = vmatprep.subr.bf16.mxu0 0
        %1173 = vmatpush1.bf16.msra.mxu0 %v1152
        %1174 = vmatprep.subr.bf16.mxu0 0
        %1175 = vmatpush1.bf16.msra.mxu0 %v1153
        %1176 = vmatprep.subr.bf16.mxu0 0
        %1177 = vmatpush1.bf16.msra.mxu0 %v1154
        %1178 = vmatprep.subr.bf16.mxu0 0
        %1179 = vmatpush1.bf16.msra.mxu0 %v1155
        %1180 = vmatprep.subr.bf16.mxu0 0
        %1181 = vmatpush1.bf16.msra.mxu0 0
        %1182 = vmatprep.subr.bf16.mxu0 0
        %1183 = vmatpush1.bf16.msra.mxu0 0
        %1184 = vmatprep.subr.bf16.mxu0 0
        %1185 = vmatpush1.bf16.msra.mxu0 0
        %1186 = vmatprep.subr.bf16.mxu0 0
        %1187 = vmatpush1.bf16.msra.mxu0 0
        %1188 = vmatprep.subr.bf16.mxu0 0
        %1189 = vmatpush1.bf16.msra.mxu0 0
        %1190 = vmatprep.subr.bf16.mxu0 0
        %1191 = vmatpush1.bf16.msra.mxu0 0
        %1192 = vmatprep.subr.bf16.mxu0 0
        %1193 = vmatpush1.bf16.msra.mxu0 0
        %1194 = vmatprep.subr.bf16.mxu0 0
        %1195 = vmatpush1.bf16.msra.mxu0 0
        %1196 = vmatprep.mubr.bf16.mxu0 0
        %1197 = vmatmul.mubr.bf16.gmra.mrb[0].mxu0 %v1098
        %v1198 = vpop.f32.mrb[0].mxu0
        %v1199 = vadd.f32 0.0, %v1198
        %v1200 = vpop.f32.mrb[0].mxu0
        %v1201 = vpop.f32.mrb[0].mxu0
        %v1202 = vpop.f32.mrb[0].mxu0
        %1203 = vdwg.mxu0
        %v1220 = vunpack.c.l.b16 %v1081
        %v1221 = vunpack.c.l.b16 %v1082
        %v1222 = vunpack.c.l.b16 %v1083
        %v1223 = vunpack.c.l.b16 %v1084
        %v1224 = vunpack.c.l.b16 %v1085
        %v1225 = vunpack.c.l.b16 %v1086
        %v1226 = vunpack.c.l.b16 %v1087
        %v1227 = vunpack.c.l.b16 %v1088
        %v1228 = vunpack.c.l.b16 %v1089
        %v1229 = vunpack.c.l.b16 %v1090
        %v1230 = vunpack.c.l.b16 %v1091
        %v1231 = vunpack.c.l.b16 %v1092
        %v1232 = vunpack.c.l.b16 %v1093
        %v1233 = vunpack.c.l.b16 %v1094
        %v1234 = vunpack.c.l.b16 %v1095
        %v1235 = vunpack.c.l.b16 %v1096
        %v1236 = vpack.c.b16 %v1221, %v1220
        %v1237 = vpack.c.b16 %v1223, %v1222
        %v1238 = vpack.c.b16 %v1225, %v1224
        %v1239 = vpack.c.b16 %v1227, %v1226
        %v1240 = vpack.c.b16 %v1229, %v1228
        %v1241 = vpack.c.b16 %v1231, %v1230
        %v1242 = vpack.c.b16 %v1233, %v1232
        %v1243 = vpack.c.b16 %v1235, %v1234
        %1252 = vmatprep.subr.bf16.mxu0 0
        %1253 = vmatpush1.bf16.msra.mxu0 %v1236
        %1254 = vmatprep.subr.bf16.mxu0 0
        %1255 = vmatpush1.bf16.msra.mxu0 %v1237
        %1256 = vmatprep.subr.bf16.mxu0 0
        %1257 = vmatpush1.bf16.msra.mxu0 %v1238
        %1258 = vmatprep.subr.bf16.mxu0 0
        %1259 = vmatpush1.bf16.msra.mxu0 %v1239
        %1260 = vmatprep.subr.bf16.mxu0 0
        %1261 = vmatpush1.bf16.msra.mxu0 %v1240
        %1262 = vmatprep.subr.bf16.mxu0 0
        %1263 = vmatpush1.bf16.msra.mxu0 %v1241
        %1264 = vmatprep.subr.bf16.mxu0 0
        %1265 = vmatpush1.bf16.msra.mxu0 %v1242
        %1266 = vmatprep.subr.bf16.mxu0 0
        %1267 = vmatpush1.bf16.msra.mxu0 %v1243
        %1268 = vmatprep.subr.bf16.mxu0 0
        %1269 = vmatpush1.bf16.msra.mxu0 0
        %1270 = vmatprep.subr.bf16.mxu0 0
        %1271 = vmatpush1.bf16.msra.mxu0 0
        %1272 = vmatprep.subr.bf16.mxu0 0
        %1273 = vmatpush1.bf16.msra.mxu0 0
        %1274 = vmatprep.subr.bf16.mxu0 0
        %1275 = vmatpush1.bf16.msra.mxu0 0
        %1276 = vmatprep.subr.bf16.mxu0 0
        %1277 = vmatpush1.bf16.msra.mxu0 0
        %1278 = vmatprep.subr.bf16.mxu0 0
        %1279 = vmatpush1.bf16.msra.mxu0 0
        %1280 = vmatprep.subr.bf16.mxu0 0
        %1281 = vmatpush1.bf16.msra.mxu0 0
        %1282 = vmatprep.subr.bf16.mxu0 0
        %1283 = vmatpush1.bf16.msra.mxu0 0
        %1284 = vmatprep.mubr.bf16.mxu0 0
        %1285 = vmatmul.mubr.bf16.gmra.mrb[0].mxu0 %v1080
        %v1286 = vpop.f32.mrb[0].mxu0
        %v1287 = vadd.f32 %v1199, %v1286
        %v1288 = vpop.f32.mrb[0].mxu0
        %v1289 = vpop.f32.mrb[0].mxu0
        %v1290 = vpop.f32.mrb[0].mxu0
        %1291 = vdwg.mxu0
        %v1292 = vld [vmem:[%s844] ss:$3 sm:$0x1]
        %v1293 = vpack.c.bf16 %v1292, %v1292
        %s1294 = scalar_lea.vmem [#allocation8], 128
        %v1295 = vld [vmem:[%s1294] sm:$0xf]
        %v1296 = vld [vmem:[%s1294 + $0x4] sm:$0xf]
        %v1297 = vld [vmem:[%s1294 + $0x8] sm:$0xf]
        %v1298 = vld [vmem:[%s1294 + $0xc] sm:$0xf]
        %v1299 = vld [vmem:[%s1294 + $0x10] sm:$0xf]
        %v1300 = vld [vmem:[%s1294 + $0x14] sm:$0xf]
        %v1301 = vld [vmem:[%s1294 + $0x18] sm:$0xf]
        %v1302 = vld [vmem:[%s1294 + $0x1c] sm:$0xf]
        %v1303 = vld [vmem:[%s1294 + $0x20] sm:$0xf]
        %v1304 = vld [vmem:[%s1294 + $0x24] sm:$0xf]
        %v1305 = vld [vmem:[%s1294 + $0x28] sm:$0xf]
        %v1306 = vld [vmem:[%s1294 + $0x2c] sm:$0xf]
        %v1307 = vld [vmem:[%s1294 + $0x30] sm:$0xf]
        %v1308 = vld [vmem:[%s1294 + $0x34] sm:$0xf]
        %v1309 = vld [vmem:[%s1294 + $0x38] sm:$0xf]
        %v1310 = vld [vmem:[%s1294 + $0x3c] sm:$0xf]
        %v1327 = vunpack.c.l.b16 %v1295
        %v1328 = vunpack.c.l.b16 %v1296
        %v1329 = vunpack.c.l.b16 %v1297
        %v1330 = vunpack.c.l.b16 %v1298
        %v1331 = vunpack.c.l.b16 %v1299
        %v1332 = vunpack.c.l.b16 %v1300
        %v1333 = vunpack.c.l.b16 %v1301
        %v1334 = vunpack.c.l.b16 %v1302
        %v1335 = vunpack.c.l.b16 %v1303
        %v1336 = vunpack.c.l.b16 %v1304
        %v1337 = vunpack.c.l.b16 %v1305
        %v1338 = vunpack.c.l.b16 %v1306
        %v1339 = vunpack.c.l.b16 %v1307
        %v1340 = vunpack.c.l.b16 %v1308
        %v1341 = vunpack.c.l.b16 %v1309
        %v1342 = vunpack.c.l.b16 %v1310
        %v1343 = vpack.c.b16 %v1328, %v1327
        %v1344 = vpack.c.b16 %v1330, %v1329
        %v1345 = vpack.c.b16 %v1332, %v1331
        %v1346 = vpack.c.b16 %v1334, %v1333
        %v1347 = vpack.c.b16 %v1336, %v1335
        %v1348 = vpack.c.b16 %v1338, %v1337
        %v1349 = vpack.c.b16 %v1340, %v1339
        %v1350 = vpack.c.b16 %v1342, %v1341
        %1359 = vmatprep.subr.bf16.mxu0 0
        %1360 = vmatpush1.bf16.msra.mxu0 %v1343
        %1361 = vmatprep.subr.bf16.mxu0 0
        %1362 = vmatpush1.bf16.msra.mxu0 %v1344
        %1363 = vmatprep.subr.bf16.mxu0 0
        %1364 = vmatpush1.bf16.msra.mxu0 %v1345
        %1365 = vmatprep.subr.bf16.mxu0 0
        %1366 = vmatpush1.bf16.msra.mxu0 %v1346
        %1367 = vmatprep.subr.bf16.mxu0 0
        %1368 = vmatpush1.bf16.msra.mxu0 %v1347
        %1369 = vmatprep.subr.bf16.mxu0 0
        %1370 = vmatpush1.bf16.msra.mxu0 %v1348
        %1371 = vmatprep.subr.bf16.mxu0 0
        %1372 = vmatpush1.bf16.msra.mxu0 %v1349
        %1373 = vmatprep.subr.bf16.mxu0 0
        %1374 = vmatpush1.bf16.msra.mxu0 %v1350
        %1375 = vmatprep.subr.bf16.mxu0 0
        %1376 = vmatpush1.bf16.msra.mxu0 0
        %1377 = vmatprep.subr.bf16.mxu0 0
        %1378 = vmatpush1.bf16.msra.mxu0 0
        %1379 = vmatprep.subr.bf16.mxu0 0
        %1380 = vmatpush1.bf16.msra.mxu0 0
        %1381 = vmatprep.subr.bf16.mxu0 0
        %1382 = vmatpush1.bf16.msra.mxu0 0
        %1383 = vmatprep.subr.bf16.mxu0 0
        %1384 = vmatpush1.bf16.msra.mxu0 0
        %1385 = vmatprep.subr.bf16.mxu0 0
        %1386 = vmatpush1.bf16.msra.mxu0 0
        %1387 = vmatprep.subr.bf16.mxu0 0
        %1388 = vmatpush1.bf16.msra.mxu0 0
        %1389 = vmatprep.subr.bf16.mxu0 0
        %1390 = vmatpush1.bf16.msra.mxu0 0
        %1391 = vmatprep.mubr.bf16.mxu0 0
        %1392 = vmatmul.mubr.bf16.gmra.mrb[0].mxu0 %v1293
        %v1393 = vpop.f32.mrb[0].mxu0
        %v1394 = vadd.f32 0.0, %v1393
        %v1395 = vpop.f32.mrb[0].mxu0
        %v1396 = vpop.f32.mrb[0].mxu0
        %v1397 = vpop.f32.mrb[0].mxu0
        %1398 = vdwg.mxu0
        %v1399 = vadd.f32 %v1287, %v1394
        %v1400 = vld [vmem:[%s8] sm:$0x1]
        %v1401 = vadd.f32 %v1399, %v1400
        %v1402 = vmul.f32 %v1401, 0.2
        %v1403 = vmax.f32 %v1401, %v1402
        %v1404 = vpack.c.bf16 %v1403, %v1403
        %v1405 = vld [vmem:[#allocation9] sm:$0xf]
        %v1406 = vld [vmem:[#allocation9 + $0x4] sm:$0xf]
        %v1407 = vld [vmem:[#allocation9 + $0x8] sm:$0xf]
        %v1408 = vld [vmem:[#allocation9 + $0xc] sm:$0xf]
        %v1409 = vld [vmem:[#allocation9 + $0x10] sm:$0xf]
        %v1410 = vld [vmem:[#allocation9 + $0x14] sm:$0xf]
        %v1411 = vld [vmem:[#allocation9 + $0x18] sm:$0xf]
        %v1412 = vld [vmem:[#allocation9 + $0x1c] sm:$0xf]
        %v1413 = vld [vmem:[#allocation9 + $0x20] sm:$0xf]
        %v1414 = vld [vmem:[#allocation9 + $0x24] sm:$0xf]
        %v1415 = vld [vmem:[#allocation9 + $0x28] sm:$0xf]
        %v1416 = vld [vmem:[#allocation9 + $0x2c] sm:$0xf]
        %v1417 = vld [vmem:[#allocation9 + $0x30] sm:$0xf]
        %v1418 = vld [vmem:[#allocation9 + $0x34] sm:$0xf]
        %v1419 = vld [vmem:[#allocation9 + $0x38] sm:$0xf]
        %v1420 = vld [vmem:[#allocation9 + $0x3c] sm:$0xf]
        %v1421 = vld [vmem:[%s10] sm:$0x1]
        %v1438 = vunpack.c.l.b16 %v1405
        %v1439 = vunpack.c.l.b16 %v1406
        %v1440 = vunpack.c.l.b16 %v1407
        %v1441 = vunpack.c.l.b16 %v1408
        %v1442 = vunpack.c.l.b16 %v1409
        %v1443 = vunpack.c.l.b16 %v1410
        %v1444 = vunpack.c.l.b16 %v1411
        %v1445 = vunpack.c.l.b16 %v1412
        %v1446 = vunpack.c.l.b16 %v1413
        %v1447 = vunpack.c.l.b16 %v1414
        %v1448 = vunpack.c.l.b16 %v1415
        %v1449 = vunpack.c.l.b16 %v1416
        %v1450 = vunpack.c.l.b16 %v1417
        %v1451 = vunpack.c.l.b16 %v1418
        %v1452 = vunpack.c.l.b16 %v1419
        %v1453 = vunpack.c.l.b16 %v1420
        %v1454 = vpack.c.b16 %v1439, %v1438
        %v1455 = vpack.c.b16 %v1441, %v1440
        %v1456 = vpack.c.b16 %v1443, %v1442
        %v1457 = vpack.c.b16 %v1445, %v1444
        %v1458 = vpack.c.b16 %v1447, %v1446
        %v1459 = vpack.c.b16 %v1449, %v1448
        %v1460 = vpack.c.b16 %v1451, %v1450
        %v1461 = vpack.c.b16 %v1453, %v1452
        %1470 = vmatprep.subr.bf16.mxu0 0
        %1471 = vmatpush1.bf16.msra.mxu0 %v1454
        %1472 = vmatprep.subr.bf16.mxu0 0
        %1473 = vmatpush1.bf16.msra.mxu0 %v1455
        %1474 = vmatprep.subr.bf16.mxu0 0
        %1475 = vmatpush1.bf16.msra.mxu0 %v1456
        %1476 = vmatprep.subr.bf16.mxu0 0
        %1477 = vmatpush1.bf16.msra.mxu0 %v1457
        %1478 = vmatprep.subr.bf16.mxu0 0
        %1479 = vmatpush1.bf16.msra.mxu0 %v1458
        %1480 = vmatprep.subr.bf16.mxu0 0
        %1481 = vmatpush1.bf16.msra.mxu0 %v1459
        %1482 = vmatprep.subr.bf16.mxu0 0
        %1483 = vmatpush1.bf16.msra.mxu0 %v1460
        %1484 = vmatprep.subr.bf16.mxu0 0
        %1485 = vmatpush1.bf16.msra.mxu0 %v1461
        %1486 = vmatprep.subr.bf16.mxu0 0
        %1487 = vmatpush1.bf16.msra.mxu0 0
        %1488 = vmatprep.subr.bf16.mxu0 0
        %1489 = vmatpush1.bf16.msra.mxu0 0
        %1490 = vmatprep.subr.bf16.mxu0 0
        %1491 = vmatpush1.bf16.msra.mxu0 0
        %1492 = vmatprep.subr.bf16.mxu0 0
        %1493 = vmatpush1.bf16.msra.mxu0 0
        %1494 = vmatprep.subr.bf16.mxu0 0
        %1495 = vmatpush1.bf16.msra.mxu0 0
        %1496 = vmatprep.subr.bf16.mxu0 0
        %1497 = vmatpush1.bf16.msra.mxu0 0
        %1498 = vmatprep.subr.bf16.mxu0 0
        %1499 = vmatpush1.bf16.msra.mxu0 0
        %1500 = vmatprep.subr.bf16.mxu0 0
        %1501 = vmatpush1.bf16.msra.mxu0 0
        %1502 = vmatprep.mubr.bf16.mxu0 0
        %1503 = vmatmul.mubr.bf16.gmra.mrb[0].mxu0 %v1404
        %v1504 = vpop.f32.mrb[0].mxu0
        %v1505 = vadd.f32 %v1421, %v1504
        %v1506 = vpop.f32.mrb[0].mxu0
        %v1507 = vpop.f32.mrb[0].mxu0
        %v1508 = vpop.f32.mrb[0].mxu0
        %1509 = vdwg.mxu0
        %v1510 = vmul.f32 %v1505, 0.2
        %v1511 = vmax.f32 %v1505, %v1510
        %v1512 = vadd.f32 %v1097, %v1511
        %v1513 = vpack.c.bf16 %v1512, %v1512
        %v1514 = vld [vmem:[#allocation11] sm:$0xf]
        %v1515 = vld [vmem:[#allocation11 + $0x4] sm:$0xf]
        %v1516 = vld [vmem:[#allocation11 + $0x8] sm:$0xf]
        %v1517 = vld [vmem:[#allocation11 + $0xc] sm:$0xf]
        %v1518 = vld [vmem:[#allocation11 + $0x10] sm:$0xf]
        %v1519 = vld [vmem:[#allocation11 + $0x14] sm:$0xf]
        %v1520 = vld [vmem:[#allocation11 + $0x18] sm:$0xf]
        %v1521 = vld [vmem:[#allocation11 + $0x1c] sm:$0xf]
        %v1522 = vld [vmem:[#allocation11 + $0x20] sm:$0xf]
        %v1523 = vld [vmem:[#allocation11 + $0x24] sm:$0xf]
        %v1524 = vld [vmem:[#allocation11 + $0x28] sm:$0xf]
        %v1525 = vld [vmem:[#allocation11 + $0x2c] sm:$0xf]
        %v1526 = vld [vmem:[#allocation11 + $0x30] sm:$0xf]
        %v1527 = vld [vmem:[#allocation11 + $0x34] sm:$0xf]
        %v1528 = vld [vmem:[#allocation11 + $0x38] sm:$0xf]
        %v1529 = vld [vmem:[#allocation11 + $0x3c] sm:$0xf]
        %v1530 = vld [vmem:[#allocation12] sm:$0x1]
        %v1547 = vunpack.c.l.b16 %v1514
        %v1548 = vunpack.c.l.b16 %v1515
        %v1549 = vunpack.c.l.b16 %v1516
        %v1550 = vunpack.c.l.b16 %v1517
        %v1551 = vunpack.c.l.b16 %v1518
        %v1552 = vunpack.c.l.b16 %v1519
        %v1553 = vunpack.c.l.b16 %v1520
        %v1554 = vunpack.c.l.b16 %v1521
        %v1555 = vunpack.c.l.b16 %v1522
        %v1556 = vunpack.c.l.b16 %v1523
        %v1557 = vunpack.c.l.b16 %v1524
        %v1558 = vunpack.c.l.b16 %v1525
        %v1559 = vunpack.c.l.b16 %v1526
        %v1560 = vunpack.c.l.b16 %v1527
        %v1561 = vunpack.c.l.b16 %v1528
        %v1562 = vunpack.c.l.b16 %v1529
        %v1563 = vpack.c.b16 %v1548, %v1547
        %v1564 = vpack.c.b16 %v1550, %v1549
        %v1565 = vpack.c.b16 %v1552, %v1551
        %v1566 = vpack.c.b16 %v1554, %v1553
        %v1567 = vpack.c.b16 %v1556, %v1555
        %v1568 = vpack.c.b16 %v1558, %v1557
        %v1569 = vpack.c.b16 %v1560, %v1559
        %v1570 = vpack.c.b16 %v1562, %v1561
        %1579 = vmatprep.subr.bf16.mxu0 0
        %1580 = vmatpush1.bf16.msra.mxu0 %v1563
        %1581 = vmatprep.subr.bf16.mxu0 0
        %1582 = vmatpush1.bf16.msra.mxu0 %v1564
        %1583 = vmatprep.subr.bf16.mxu0 0
        %1584 = vmatpush1.bf16.msra.mxu0 %v1565
        %1585 = vmatprep.subr.bf16.mxu0 0
        %1586 = vmatpush1.bf16.msra.mxu0 %v1566
        %1587 = vmatprep.subr.bf16.mxu0 0
        %1588 = vmatpush1.bf16.msra.mxu0 %v1567
        %1589 = vmatprep.subr.bf16.mxu0 0
        %1590 = vmatpush1.bf16.msra.mxu0 %v1568
        %1591 = vmatprep.subr.bf16.mxu0 0
        %1592 = vmatpush1.bf16.msra.mxu0 %v1569
        %1593 = vmatprep.subr.bf16.mxu0 0
        %1594 = vmatpush1.bf16.msra.mxu0 %v1570
        %1595 = vmatprep.subr.bf16.mxu0 0
        %1596 = vmatpush1.bf16.msra.mxu0 0
        %1597 = vmatprep.subr.bf16.mxu0 0
        %1598 = vmatpush1.bf16.msra.mxu0 0
        %1599 = vmatprep.subr.bf16.mxu0 0
        %1600 = vmatpush1.bf16.msra.mxu0 0
        %1601 = vmatprep.subr.bf16.mxu0 0
        %1602 = vmatpush1.bf16.msra.mxu0 0
        %1603 = vmatprep.subr.bf16.mxu0 0
        %1604 = vmatpush1.bf16.msra.mxu0 0
        %1605 = vmatprep.subr.bf16.mxu0 0
        %1606 = vmatpush1.bf16.msra.mxu0 0
        %1607 = vmatprep.subr.bf16.mxu0 0
        %1608 = vmatpush1.bf16.msra.mxu0 0
        %1609 = vmatprep.subr.bf16.mxu0 0
        %1610 = vmatpush1.bf16.msra.mxu0 0
        %1611 = vmatprep.mubr.bf16.mxu0 0
        %1612 = vmatmul.mubr.bf16.gmra.mrb[0].mxu0 %v1513
        %v1613 = vpop.f32.mrb[0].mxu0
        %v1614 = vadd.f32 %v1530, %v1613
        %v1615 = vpop.f32.mrb[0].mxu0
        %v1616 = vpop.f32.mrb[0].mxu0
        %v1617 = vpop.f32.mrb[0].mxu0
        %1618 = vdwg.mxu0
        %1619 = vst [vmem:[%s541] sm:$0x1] %v1614
        %s1620 = sand.u32 %s333, 1
        %s1621 = scalar_lea.sflag [#allocation5], %s1620
        %s1622 = sand.u32 %s333, 1
        %s1623 = scalar_lea.vmem [#allocation14], %s1622
        // Predicated region
        $region97: #{temporal_block_forward.1} parent=71 // pred_check
          %p1624 = pneg %p343
        $region98: #{temporal_block_forward.1} parent=71 // pred_check_branch
          %1626 = sbr.rel (%p1624) target = $region100
        $region99: #{temporal_block_forward.1} parent=71 // pred_region
          %s1628 = ssub.s32 16, 16
          %1629 = vsyncadd %s1621, %s1628
          %s1630 = sadd.s32 %s36, %s35
          %s1631 = smul.addr %s1630, 16
          %s1632 = scalar_lea.hbm %s13, %s1631
          %s1634 = sshll.u32 %s1623, 4
          %s1635 = int_to_ptr.vmem [resolvable:$true] %s1634
          %1637 = dma.vmem_to_hbm [thread:$0]  %s1635, 16, %s1632, %s1621
        $region100: #{temporal_block_forward.1} parent=71 // pred_fallthru
          _
      $region72: #{temporal_block_forward.1} parent=5 // pred_fallthru
        _
      %p1638 = scmp.le.s32.totalorder 2, %s26
      // Predicated region
      $region101: #{temporal_block_forward.1} parent=5 // pred_check
        %p1639 = pneg %p1638
      $region102: #{temporal_block_forward.1} parent=5 // pred_check_branch
        %1641 = sbr.rel (%p1639) target = $region104
      $region103: #{temporal_block_forward.1} parent=5 // pred_region
        %s1642 = ssub.s32 %s26, 2
        // Predicated region
        $region105: #{temporal_block_forward.1} parent=103 // pred_check
          %p1643 = pneg %p349
        $region106: #{temporal_block_forward.1} parent=103 // pred_check_branch
          %1645 = sbr.rel (%p1643) target = $region108
        $region107: #{temporal_block_forward.1} parent=103 // pred_region
          %s1646 = sand.u32 %s334, 1
          %s1647 = scalar_lea.sflag [#allocation5], %s1646
          %s1648 = sand.u32 %s334, 1
          %s1649 = scalar_lea.vmem [#allocation14], %s1648
          %1650 = dma.done %s1647, 16
        $region108: #{temporal_block_forward.1} parent=103 // pred_fallthru
          _
      $region104: #{temporal_block_forward.1} parent=5 // pred_fallthru
        _
    $region6: #{temporal_block_forward.1} parent=1 // loop_footer
      %s30 = sadd.s32 1, %s26
    $region7: #{temporal_block_forward.1} parent=1 // loop_footer_branch
      %25 = sbr.rel target = $region3
    $region8: #{temporal_block_forward.1} parent=1 // loop_exit
      _
    %1651 = vsyncpa [#allocation4], 1
    %s1652 = scalar_lea.sflag [#allocation4], 1
    %1653 = vsyncpa %s1652, 1
    %1654 = vsyncpa [#allocation7], 1
    %1655 = vsyncpa [#allocation10], 1
    %1656 = vsyncpa [#allocation13], 1
    %1657 = vsyncpa [#allocation5], 1
    %s1658 = scalar_lea.sflag [#allocation5], 1
    %1659 = vsyncpa %s1658, 1

</llo_original>
